<compile_context>
chip_gen: v6e
topology: v6e:2x2x1
jax: 0.10.0
libtpu: 0.0.40
codegen_flags: <defaults>
</compile_context>

<pallas_src>
import functools
import math

import jax
import jax.numpy as jnp
from jax import lax
from jax.experimental import pallas as pl
from jax.experimental.pallas import tpu as pltpu

# ----------------------- model hyper-parameters (small) ----------------------
VOCAB = 64          # stand-in for bert-base-uncased's 30522 vocab
MAX_POS = 16
TYPE_VOCAB = 2      # token_type_ids carries the predicate indicator (0/1)
HIDDEN = 32         # stand-in for 768
NUM_HEADS = 2
HEAD_DIM = HIDDEN // NUM_HEADS
INTERMEDIATE = 64   # stand-in for 3072
NUM_LAYERS = 2      # stand-in for 12
NUM_LABELS = 8      # role_to_id is empty in the source -> pick a nonzero size
LABEL_PAD = 128     # lane-dense classifier output, sliced back to NUM_LABELS
LN_EPS = 1e-12


# ------------------------------- Pallas kernel --------------------------------
def _ln(h, g, b, eps):
    """f32 layer-norm over the last dim."""
    mu = jnp.mean(h, axis=-1, keepdims=True)
    var = jnp.mean(jnp.square(h - mu), axis=-1, keepdims=True)
    return (h - mu) * lax.rsqrt(var + eps) * g + b


def _srl_forward_kernel(x_ref, bias_ref,
                        emb_g_ref, emb_b_ref,
                        wqkv_ref, bqkv_ref, wo_ref, bo_ref,
                        ln1_g_ref, ln1_b_ref,
                        w1_ref, b1_ref, w2_ref, b2_ref,
                        ln2_g_ref, ln2_b_ref,
                        wc_ref, bc_ref,
                        o_ref,
                        ctx_ref,
                        *, num_layers, num_heads, head_dim, scale, eps):
    """Full SrlModel forward for one batch element (block [S, H] -> [S, 128])."""
    hidden = num_heads * head_dim
    bias = bias_ref[...]                                   # [1, S] f32 mask bias

    # ---- embedding layer-norm (start of the residual stream, f32) ----
    x0 = _ln(x_ref[...].astype(jnp.float32), emb_g_ref[...], emb_b_ref[...], eps)

    def layer_body(l, x):                                  # x: [S, H] f32
        # fused QKV projection: one MXU pass over the packed [H, 3H] weight
        qkv = jnp.dot(x.astype(jnp.bfloat16), wqkv_ref[l],
                      preferred_element_type=jnp.float32) + bqkv_ref[l]

        # per-head attention; each head's context lands in its lane range of
        # the [S, H] scratch (heads are contiguous column blocks), so per-head
        # temporaries die at the store and the output projection is a single
        # K=H matmul after the loop.
        for h in range(num_heads):
            lo = h * head_dim
            q = qkv[:, lo:lo + head_dim] * scale           # scale folded into q
            k = qkv[:, hidden + lo:hidden + lo + head_dim]
            v = qkv[:, 2 * hidden + lo:2 * hidden + lo + head_dim]
            s = jnp.dot(q, k.T, preferred_element_type=jnp.float32) + bias
            m = jnp.max(s, axis=-1, keepdims=True)
            p = jnp.exp(s - m)                             # softmax kept in f32
            inv = pl.reciprocal(jnp.sum(p, axis=-1, keepdims=True), approx=True)
            ctx_ref[:, lo:lo + head_dim] = (
                jnp.dot(p, v, preferred_element_type=jnp.float32) * inv)

        # single [S,H] @ [H,H] output projection + residual + LN1
        attn = jnp.dot(ctx_ref[...].astype(jnp.bfloat16), wo_ref[l],
                       preferred_element_type=jnp.float32) + bo_ref[l]
        x1 = _ln(attn + x, ln1_g_ref[l], ln1_b_ref[l], eps)

        # FFN: w1 -> GELU -> w2, residual + LN2
        inter = jnp.dot(x1.astype(jnp.bfloat16), w1_ref[l],
                        preferred_element_type=jnp.float32) + b1_ref[l]
        # TODO(synk): BERT uses exact erf-GELU; tanh approximation used here.
        c = math.sqrt(2.0 / math.pi)
        inter = 0.5 * inter * (
            1.0 + jnp.tanh(c * (inter + 0.044715 * inter * inter * inter)))
        ffn = jnp.dot(inter.astype(jnp.bfloat16), w2_ref[l],
                      preferred_element_type=jnp.float32) + b2_ref[l]
        return _ln(ffn + x1, ln2_g_ref[l], ln2_b_ref[l], eps)

    x_out = lax.fori_loop(0, num_layers, layer_body, x0)   # [S, H] f32

    # ---- classifier head, lane-dense (N=128) output store ----
    o_ref[...] = (jnp.dot(x_out.astype(jnp.bfloat16), wc_ref[...],
                          preferred_element_type=jnp.float32)
                  + bc_ref[...]).astype(o_ref.dtype)


# ------------------------------ kernel wrapper --------------------------------
def fused_forward(x_emb, bias, p):
    B, S, H = x_emb.shape
    L = NUM_LAYERS

    def resident(shape):
        nd = len(shape)
        return pl.BlockSpec(shape, lambda b: (0,) * nd)    # stays in VMEM across grid

    return pl.pallas_call(
        functools.partial(_srl_forward_kernel,
                          num_layers=NUM_LAYERS, num_heads=NUM_HEADS,
                          head_dim=HEAD_DIM, scale=1.0 / math.sqrt(HEAD_DIM),
                          eps=LN_EPS),
        out_shape=jax.ShapeDtypeStruct((B, S, LABEL_PAD), jnp.float32),
        grid=(B,),
        in_specs=[
            pl.BlockSpec((None, S, H), lambda b: (b, 0, 0)),       # embedded sum
            pl.BlockSpec((None, 1, S), lambda b: (b, 0, 0)),       # mask bias
            resident((1, H)), resident((1, H)),                    # emb LN gamma/beta
            resident((L, H, 3 * H)), resident((L, 1, 3 * H)),      # packed QKV
            resident((L, H, H)), resident((L, 1, H)),              # output proj
            resident((L, 1, H)), resident((L, 1, H)),              # LN1 gamma/beta
            resident((L, H, INTERMEDIATE)), resident((L, 1, INTERMEDIATE)),
            resident((L, INTERMEDIATE, H)), resident((L, 1, H)),
            resident((L, 1, H)), resident((L, 1, H)),              # LN2 gamma/beta
            resident((H, LABEL_PAD)), resident((1, LABEL_PAD)),    # classifier
        ],
        out_specs=pl.BlockSpec((None, S, LABEL_PAD), lambda b: (b, 0, 0)),
        scratch_shapes=[pltpu.VMEM((S, H), jnp.float32)],          # per-head ctx
        compiler_params=pltpu.CompilerParams(
            dimension_semantics=("parallel",)),                    # v7x: 2 TCs
    )(x_emb, bias,
      p["emb_ln_g"], p["emb_ln_b"],
      p["wqkv"], p["bqkv"], p["wo"], p["bo"],
      p["ln1_g"], p["ln1_b"], p["w1"], p["b1"], p["w2"], p["b2"],
      p["ln2_g"], p["ln2_b"], p["wc"], p["bc"])


# ------------------------------ parameter init --------------------------------
def init_params(key):
    def normal(k, shape):
        return jax.random.normal(k, shape, jnp.float32) * 0.02

    keys = iter(jax.random.split(key, 8 + 8 * NUM_LAYERS))
    wc = normal(next(keys), (HIDDEN, NUM_LABELS))
    wc_pad = jnp.zeros((HIDDEN, LABEL_PAD), jnp.float32).at[:, :NUM_LABELS].set(wc)

    params = {
        "word_emb": normal(next(keys), (VOCAB, HIDDEN)),
        "pos_emb": normal(next(keys), (MAX_POS, HIDDEN)),
        "type_emb": normal(next(keys), (TYPE_VOCAB, HIDDEN)),
        "emb_ln_g": jnp.ones((1, HIDDEN), jnp.float32),
        "emb_ln_b": jnp.zeros((1, HIDDEN), jnp.float32),
        "wc": wc_pad.astype(jnp.bfloat16),                 # lane-padded classifier
        "bc": jnp.zeros((1, LABEL_PAD), jnp.float32),
    }

    wqkv, wo, w1, w2 = [], [], [], []
    for _ in range(NUM_LAYERS):
        wq = normal(next(keys), (HIDDEN, HIDDEN))
        wk = normal(next(keys), (HIDDEN, HIDDEN))
        wv = normal(next(keys), (HIDDEN, HIDDEN))
        # Wq/Wk/Wv packed once at init -> single fused QKV matmul per layer
        wqkv.append(jnp.concatenate([wq, wk, wv], axis=1))
        wo.append(normal(next(keys), (HIDDEN, HIDDEN)))
        w1.append(normal(next(keys), (HIDDEN, INTERMEDIATE)))
        w2.append(normal(next(keys), (INTERMEDIATE, HIDDEN)))

    # stacked [L, ...] layer weights -> a single resident BlockSpec each
    params.update({
        "wqkv": jnp.stack(wqkv).astype(jnp.bfloat16),
        "bqkv": jnp.zeros((NUM_LAYERS, 1, 3 * HIDDEN), jnp.float32),
        "wo": jnp.stack(wo).astype(jnp.bfloat16),
        "bo": jnp.zeros((NUM_LAYERS, 1, HIDDEN), jnp.float32),
        "ln1_g": jnp.ones((NUM_LAYERS, 1, HIDDEN), jnp.float32),
        "ln1_b": jnp.zeros((NUM_LAYERS, 1, HIDDEN), jnp.float32),
        "w1": jnp.stack(w1).astype(jnp.bfloat16),
        "b1": jnp.zeros((NUM_LAYERS, 1, INTERMEDIATE), jnp.float32),
        "w2": jnp.stack(w2).astype(jnp.bfloat16),
        "b2": jnp.zeros((NUM_LAYERS, 1, HIDDEN), jnp.float32),
        "ln2_g": jnp.ones((NUM_LAYERS, 1, HIDDEN), jnp.float32),
        "ln2_b": jnp.zeros((NUM_LAYERS, 1, HIDDEN), jnp.float32),
    })
    return params


# --------------------------------- forward ------------------------------------
def srl_forward(params, input_ids, attn_mask, pred_indicator):
    """Mirrors SrlModel.forward: BERT(input_ids, attn_mask, token_type=pred) -> Linear."""
    B, S = input_ids.shape
    # embedding gathers are plain-JAX glue; everything else is one Pallas kernel
    x = (params["word_emb"][input_ids]
         + params["pos_emb"][jnp.arange(S)][None, :, :]
         + params["type_emb"][pred_indicator])                     # [B,S,H] f32
    # additive mask bias, f32, one copy per batch (no per-head replication)
    bias = ((1.0 - attn_mask.astype(jnp.float32)) * -1e9).reshape(B, 1, S)

    logits_pad = fused_forward(x, bias, params)                    # [B,S,128] f32
    return logits_pad[..., :NUM_LABELS]                            # [B,S,NUM_LABELS]


# ----------------------------------- main --------------------------------------
if __name__ == "__main__":
    key = jax.random.PRNGKey(0)
    kp, kid = jax.random.split(key)

    B, S = 2, 8
    params = init_params(kp)

    input_ids = jax.random.randint(kid, (B, S), 0, VOCAB, dtype=jnp.int32)
    # simple attention mask with some padding, and a one-hot predicate indicator
    attn_mask = jnp.ones((B, S), jnp.int32).at[:, 6:].set(0)
    pred_indicator = jnp.zeros((B, S), jnp.int32).at[:, 2].set(1)

    logits = jax.jit(srl_forward)(params, input_ids, attn_mask, pred_indicator)
    jax.block_until_ready(logits)
    assert logits.shape == (B, S, NUM_LABELS)
    print("KERNEL_OK")
</pallas_src>

<mosaic_0001>
module attributes {stable_mosaic.version = 11 : i64} {
  func.func @_srl_forward_kernel(%arg0: i32, %arg1: memref<1x8x32xf32, #tpu.memory_space<vmem>>, %arg2: memref<1x1x8xf32, #tpu.memory_space<vmem>>, %arg3: memref<1x32xf32, #tpu.memory_space<vmem>>, %arg4: memref<1x32xf32, #tpu.memory_space<vmem>>, %arg5: memref<2x32x96xbf16, #tpu.memory_space<vmem>>, %arg6: memref<2x1x96xf32, #tpu.memory_space<vmem>>, %arg7: memref<2x32x32xbf16, #tpu.memory_space<vmem>>, %arg8: memref<2x1x32xf32, #tpu.memory_space<vmem>>, %arg9: memref<2x1x32xf32, #tpu.memory_space<vmem>>, %arg10: memref<2x1x32xf32, #tpu.memory_space<vmem>>, %arg11: memref<2x32x64xbf16, #tpu.memory_space<vmem>>, %arg12: memref<2x1x64xf32, #tpu.memory_space<vmem>>, %arg13: memref<2x64x32xbf16, #tpu.memory_space<vmem>>, %arg14: memref<2x1x32xf32, #tpu.memory_space<vmem>>, %arg15: memref<2x1x32xf32, #tpu.memory_space<vmem>>, %arg16: memref<2x1x32xf32, #tpu.memory_space<vmem>>, %arg17: memref<32x128xbf16, #tpu.memory_space<vmem>>, %arg18: memref<1x128xf32, #tpu.memory_space<vmem>>, %arg19: memref<1x8x128xf32, #tpu.memory_space<vmem>>, %arg20: memref<8x32xf32, #tpu.memory_space<vmem>>) attributes {dimension_semantics = [#tpu.dimension_semantics<parallel>], iteration_bounds = array<i64: 2>, scalar_prefetch = 0 : i64, scratch_operands = 1 : i64, tpu.core_type = #tpu.core_type<tc>, window_params = [{transform_indices = @transform_0, window_bounds = array<i64: 1, 8, 32>}, {transform_indices = @transform_1, window_bounds = array<i64: 1, 1, 8>}, {pipeline_mode = #tpu.pipeline_mode<synchronous>, transform_indices = @transform_2, window_bounds = array<i64: 1, 32>}, {pipeline_mode = #tpu.pipeline_mode<synchronous>, transform_indices = @transform_3, window_bounds = array<i64: 1, 32>}, {pipeline_mode = #tpu.pipeline_mode<synchronous>, transform_indices = @transform_4, window_bounds = array<i64: 2, 32, 96>}, {pipeline_mode = #tpu.pipeline_mode<synchronous>, transform_indices = @transform_5, window_bounds = array<i64: 2, 1, 96>}, {pipeline_mode = #tpu.pipeline_mode<synchronous>, transform_indices = @transform_6, window_bounds = array<i64: 2, 32, 32>}, {pipeline_mode = #tpu.pipeline_mode<synchronous>, transform_indices = @transform_7, window_bounds = array<i64: 2, 1, 32>}, {pipeline_mode = #tpu.pipeline_mode<synchronous>, transform_indices = @transform_8, window_bounds = array<i64: 2, 1, 32>}, {pipeline_mode = #tpu.pipeline_mode<synchronous>, transform_indices = @transform_9, window_bounds = array<i64: 2, 1, 32>}, {pipeline_mode = #tpu.pipeline_mode<synchronous>, transform_indices = @transform_10, window_bounds = array<i64: 2, 32, 64>}, {pipeline_mode = #tpu.pipeline_mode<synchronous>, transform_indices = @transform_11, window_bounds = array<i64: 2, 1, 64>}, {pipeline_mode = #tpu.pipeline_mode<synchronous>, transform_indices = @transform_12, window_bounds = array<i64: 2, 64, 32>}, {pipeline_mode = #tpu.pipeline_mode<synchronous>, transform_indices = @transform_13, window_bounds = array<i64: 2, 1, 32>}, {pipeline_mode = #tpu.pipeline_mode<synchronous>, transform_indices = @transform_14, window_bounds = array<i64: 2, 1, 32>}, {pipeline_mode = #tpu.pipeline_mode<synchronous>, transform_indices = @transform_15, window_bounds = array<i64: 2, 1, 32>}, {pipeline_mode = #tpu.pipeline_mode<synchronous>, transform_indices = @transform_16, window_bounds = array<i64: 32, 128>}, {pipeline_mode = #tpu.pipeline_mode<synchronous>, transform_indices = @transform_17, window_bounds = array<i64: 1, 128>}, {transform_indices = @transform_18, window_bounds = array<i64: 1, 8, 128>}]} {
    %c0 = arith.constant 0 : index
    %c0_0 = arith.constant 0 : index
    %c0_1 = arith.constant 0 : index
    %0 = vector.load %arg2[%c0, %c0_0, %c0_1] : memref<1x1x8xf32, #tpu.memory_space<vmem>>, vector<1x1x8xf32>
    %1 = vector.shape_cast %0 : vector<1x1x8xf32> to vector<1x8xf32>
    %c0_2 = arith.constant 0 : index
    %c0_3 = arith.constant 0 : index
    %c0_4 = arith.constant 0 : index
    %2 = vector.load %arg1[%c0_2, %c0_3, %c0_4] : memref<1x8x32xf32, #tpu.memory_space<vmem>>, vector<1x8x32xf32>
    %3 = vector.shape_cast %2 : vector<1x8x32xf32> to vector<8x32xf32>
    %c0_5 = arith.constant 0 : index
    %c0_6 = arith.constant 0 : index
    %4 = vector.load %arg3[%c0_5, %c0_6] : memref<1x32xf32, #tpu.memory_space<vmem>>, vector<1x32xf32>
    %c0_7 = arith.constant 0 : index
    %c0_8 = arith.constant 0 : index
    %5 = vector.load %arg4[%c0_7, %c0_8] : memref<1x32xf32, #tpu.memory_space<vmem>>, vector<1x32xf32>
    %cst = arith.constant dense<0.000000e+00> : vector<8xf32>
    %6 = vector.multi_reduction <add>, %3, %cst [1] : vector<8x32xf32> to vector<8xf32>
    %7 = vector.shape_cast %6 : vector<8xf32> to vector<8x1xf32>
    %cst_9 = arith.constant 3.200000e+01 : f32
    %8 = vector.broadcast %cst_9 : f32 to vector<8x1xf32>
    %9 = arith.divf %7, %8 : vector<8x1xf32>
    %10 = vector.broadcast %9 : vector<8x1xf32> to vector<8x32xf32>
    %11 = arith.subf %3, %10 : vector<8x32xf32>
    %12 = arith.mulf %11, %11 : vector<8x32xf32>
    %cst_10 = arith.constant dense<0.000000e+00> : vector<8xf32>
    %13 = vector.multi_reduction <add>, %12, %cst_10 [1] : vector<8x32xf32> to vector<8xf32>
    %14 = vector.shape_cast %13 : vector<8xf32> to vector<8x1xf32>
    %cst_11 = arith.constant 3.200000e+01 : f32
    %15 = vector.broadcast %cst_11 : f32 to vector<8x1xf32>
    %16 = arith.divf %14, %15 : vector<8x1xf32>
    %17 = vector.broadcast %9 : vector<8x1xf32> to vector<8x32xf32>
    %18 = arith.subf %3, %17 : vector<8x32xf32>
    %cst_12 = arith.constant 9.99999996E-13 : f32
    %19 = vector.broadcast %cst_12 : f32 to vector<8x1xf32>
    %20 = arith.addf %16, %19 : vector<8x1xf32>
    %21 = math.rsqrt %20 : vector<8x1xf32>
    %22 = vector.broadcast %21 : vector<8x1xf32> to vector<8x32xf32>
    %23 = arith.mulf %18, %22 : vector<8x32xf32>
    %24 = vector.broadcast %4 : vector<1x32xf32> to vector<8x32xf32>
    %25 = arith.mulf %23, %24 : vector<8x32xf32>
    %26 = vector.broadcast %5 : vector<1x32xf32> to vector<8x32xf32>
    %27 = arith.addf %25, %26 : vector<8x32xf32>
    %c0_i32 = arith.constant 0 : i32
    %c2_i32 = arith.constant 2 : i32
    %28 = arith.addi %c0_i32, %c2_i32 : i32
    %c1_i32 = arith.constant 1 : i32
    %29 = scf.for %arg21 = %c0_i32 to %28 step %c1_i32 iter_args(%arg22 = %27) -> (vector<8x32xf32>)  : i32 {
      %39 = arith.truncf %arg22 : vector<8x32xf32> to vector<8x32xbf16>
      %40 = arith.index_cast %arg21 : i32 to index
      %c0_22 = arith.constant 0 : index
      %c0_23 = arith.constant 0 : index
      %41 = vector.load %arg5[%40, %c0_22, %c0_23] : memref<2x32x96xbf16, #tpu.memory_space<vmem>>, vector<1x32x96xbf16>
      %42 = vector.shape_cast %41 : vector<1x32x96xbf16> to vector<32x96xbf16>
      %cst_24 = arith.constant dense<0.000000e+00> : vector<8x96xf32>
      %43 = tpu.matmul %39, %42, %cst_24 {dimension_numbers = #tpu.dot_dimension_numbers<[1], [0], [0], [1], [0, 0, 1, 1], [], []>} : vector<8x32xbf16>, vector<32x96xbf16>, vector<8x96xf32> -> vector<8x96xf32>
      %44 = arith.index_cast %arg21 : i32 to index
      %c0_25 = arith.constant 0 : index
      %c0_26 = arith.constant 0 : index
      %45 = vector.load %arg6[%44, %c0_25, %c0_26] : memref<2x1x96xf32, #tpu.memory_space<vmem>>, vector<1x1x96xf32>
      %46 = vector.shape_cast %45 : vector<1x1x96xf32> to vector<1x96xf32>
      %47 = vector.broadcast %46 : vector<1x96xf32> to vector<8x96xf32>
      %48 = arith.addf %43, %47 : vector<8x96xf32>
      %49 = vector.extract_strided_slice %48 {offsets = [0, 0], sizes = [8, 16], strides = [1, 1]} : vector<8x96xf32> to vector<8x16xf32>
      %cst_27 = arith.constant 2.500000e-01 : f32
      %50 = vector.broadcast %cst_27 : f32 to vector<8x16xf32>
      %51 = arith.mulf %49, %50 : vector<8x16xf32>
      %52 = vector.extract_strided_slice %48 {offsets = [0, 32], sizes = [8, 16], strides = [1, 1]} : vector<8x96xf32> to vector<8x16xf32>
      %53 = vector.extract_strided_slice %48 {offsets = [0, 64], sizes = [8, 16], strides = [1, 1]} : vector<8x96xf32> to vector<8x16xf32>
      %54 = tpu.transpose %52, [1, 0] : vector<8x16xf32> -> vector<16x8xf32>
      %cst_28 = arith.constant dense<0.000000e+00> : vector<8x8xf32>
      %55 = tpu.matmul %51, %54, %cst_28 {dimension_numbers = #tpu.dot_dimension_numbers<[1], [0], [0], [1], [0, 0, 1, 1], [], []>} : vector<8x16xf32>, vector<16x8xf32>, vector<8x8xf32> -> vector<8x8xf32>
      %56 = vector.broadcast %1 : vector<1x8xf32> to vector<8x8xf32>
      %57 = arith.addf %55, %56 : vector<8x8xf32>
      %cst_29 = arith.constant dense<0xFF800000> : vector<8xf32>
      %58 = vector.multi_reduction <maximumf>, %57, %cst_29 [1] : vector<8x8xf32> to vector<8xf32>
      %59 = vector.shape_cast %58 : vector<8xf32> to vector<8x1xf32>
      %60 = vector.broadcast %59 : vector<8x1xf32> to vector<8x8xf32>
      %61 = arith.subf %57, %60 : vector<8x8xf32>
      %62 = math.exp %61 : vector<8x8xf32>
      %cst_30 = arith.constant dense<0.000000e+00> : vector<8xf32>
      %63 = vector.multi_reduction <add>, %62, %cst_30 [1] : vector<8x8xf32> to vector<8xf32>
      %64 = vector.shape_cast %63 : vector<8xf32> to vector<8x1xf32>
      %65 = tpu.reciprocal %64 {approx = true} : vector<8x1xf32> -> vector<8x1xf32>
      %cst_31 = arith.constant dense<0.000000e+00> : vector<8x16xf32>
      %66 = tpu.matmul %62, %53, %cst_31 {dimension_numbers = #tpu.dot_dimension_numbers<[1], [0], [0], [1], [0, 0, 1, 1], [], []>} : vector<8x8xf32>, vector<8x16xf32>, vector<8x16xf32> -> vector<8x16xf32>
      %67 = vector.broadcast %65 : vector<8x1xf32> to vector<8x16xf32>
      %68 = arith.mulf %66, %67 : vector<8x16xf32>
      %c0_32 = arith.constant 0 : index
      %c0_33 = arith.constant 0 : index
      %69 = vector.load %arg20[%c0_32, %c0_33] : memref<8x32xf32, #tpu.memory_space<vmem>>, vector<8x16xf32>
      tpu.vector_store %arg20[%c0_32, %c0_33], %68 {strides = array<i32>} : memref<8x32xf32, #tpu.memory_space<vmem>>, vector<8x16xf32>,
      %70 = vector.extract_strided_slice %48 {offsets = [0, 16], sizes = [8, 16], strides = [1, 1]} : vector<8x96xf32> to vector<8x16xf32>
      %cst_34 = arith.constant 2.500000e-01 : f32
      %71 = vector.broadcast %cst_34 : f32 to vector<8x16xf32>
      %72 = arith.mulf %70, %71 : vector<8x16xf32>
      %73 = vector.extract_strided_slice %48 {offsets = [0, 48], sizes = [8, 16], strides = [1, 1]} : vector<8x96xf32> to vector<8x16xf32>
      %74 = vector.extract_strided_slice %48 {offsets = [0, 80], sizes = [8, 16], strides = [1, 1]} : vector<8x96xf32> to vector<8x16xf32>
      %75 = tpu.transpose %73, [1, 0] : vector<8x16xf32> -> vector<16x8xf32>
      %cst_35 = arith.constant dense<0.000000e+00> : vector<8x8xf32>
      %76 = tpu.matmul %72, %75, %cst_35 {dimension_numbers = #tpu.dot_dimension_numbers<[1], [0], [0], [1], [0, 0, 1, 1], [], []>} : vector<8x16xf32>, vector<16x8xf32>, vector<8x8xf32> -> vector<8x8xf32>
      %77 = vector.broadcast %1 : vector<1x8xf32> to vector<8x8xf32>
      %78 = arith.addf %76, %77 : vector<8x8xf32>
      %cst_36 = arith.constant dense<0xFF800000> : vector<8xf32>
      %79 = vector.multi_reduction <maximumf>, %78, %cst_36 [1] : vector<8x8xf32> to vector<8xf32>
      %80 = vector.shape_cast %79 : vector<8xf32> to vector<8x1xf32>
      %81 = vector.broadcast %80 : vector<8x1xf32> to vector<8x8xf32>
      %82 = arith.subf %78, %81 : vector<8x8xf32>
      %83 = math.exp %82 : vector<8x8xf32>
      %cst_37 = arith.constant dense<0.000000e+00> : vector<8xf32>
      %84 = vector.multi_reduction <add>, %83, %cst_37 [1] : vector<8x8xf32> to vector<8xf32>
      %85 = vector.shape_cast %84 : vector<8xf32> to vector<8x1xf32>
      %86 = tpu.reciprocal %85 {approx = true} : vector<8x1xf32> -> vector<8x1xf32>
      %cst_38 = arith.constant dense<0.000000e+00> : vector<8x16xf32>
      %87 = tpu.matmul %83, %74, %cst_38 {dimension_numbers = #tpu.dot_dimension_numbers<[1], [0], [0], [1], [0, 0, 1, 1], [], []>} : vector<8x8xf32>, vector<8x16xf32>, vector<8x16xf32> -> vector<8x16xf32>
      %88 = vector.broadcast %86 : vector<8x1xf32> to vector<8x16xf32>
      %89 = arith.mulf %87, %88 : vector<8x16xf32>
      %c0_39 = arith.constant 0 : index
      %c16 = arith.constant 16 : index
      %90 = vector.load %arg20[%c0_39, %c16] : memref<8x32xf32, #tpu.memory_space<vmem>>, vector<8x16xf32>
      tpu.vector_store %arg20[%c0_39, %c16], %89 {strides = array<i32>} : memref<8x32xf32, #tpu.memory_space<vmem>>, vector<8x16xf32>,
      %c0_40 = arith.constant 0 : index
      %c0_41 = arith.constant 0 : index
      %91 = vector.load %arg20[%c0_40, %c0_41] : memref<8x32xf32, #tpu.memory_space<vmem>>, vector<8x32xf32>
      %92 = arith.truncf %91 : vector<8x32xf32> to vector<8x32xbf16>
      %93 = arith.index_cast %arg21 : i32 to index
      %c0_42 = arith.constant 0 : index
      %c0_43 = arith.constant 0 : index
      %94 = vector.load %arg7[%93, %c0_42, %c0_43] : memref<2x32x32xbf16, #tpu.memory_space<vmem>>, vector<1x32x32xbf16>
      %95 = vector.shape_cast %94 : vector<1x32x32xbf16> to vector<32x32xbf16>
      %cst_44 = arith.constant dense<0.000000e+00> : vector<8x32xf32>
      %96 = tpu.matmul %92, %95, %cst_44 {dimension_numbers = #tpu.dot_dimension_numbers<[1], [0], [0], [1], [0, 0, 1, 1], [], []>} : vector<8x32xbf16>, vector<32x32xbf16>, vector<8x32xf32> -> vector<8x32xf32>
      %97 = arith.index_cast %arg21 : i32 to index
      %c0_45 = arith.constant 0 : index
      %c0_46 = arith.constant 0 : index
      %98 = vector.load %arg8[%97, %c0_45, %c0_46] : memref<2x1x32xf32, #tpu.memory_space<vmem>>, vector<1x1x32xf32>
      %99 = vector.shape_cast %98 : vector<1x1x32xf32> to vector<1x32xf32>
      %100 = vector.broadcast %99 : vector<1x32xf32> to vector<8x32xf32>
      %101 = arith.addf %96, %100 : vector<8x32xf32>
      %102 = arith.addf %101, %arg22 : vector<8x32xf32>
      %103 = arith.index_cast %arg21 : i32 to index
      %c0_47 = arith.constant 0 : index
      %c0_48 = arith.constant 0 : index
      %104 = vector.load %arg9[%103, %c0_47, %c0_48] : memref<2x1x32xf32, #tpu.memory_space<vmem>>, vector<1x1x32xf32>
      %105 = vector.shape_cast %104 : vector<1x1x32xf32> to vector<1x32xf32>
      %106 = arith.index_cast %arg21 : i32 to index
      %c0_49 = arith.constant 0 : index
      %c0_50 = arith.constant 0 : index
      %107 = vector.load %arg10[%106, %c0_49, %c0_50] : memref<2x1x32xf32, #tpu.memory_space<vmem>>, vector<1x1x32xf32>
      %108 = vector.shape_cast %107 : vector<1x1x32xf32> to vector<1x32xf32>
      %cst_51 = arith.constant dense<0.000000e+00> : vector<8xf32>
      %109 = vector.multi_reduction <add>, %102, %cst_51 [1] : vector<8x32xf32> to vector<8xf32>
      %110 = vector.shape_cast %109 : vector<8xf32> to vector<8x1xf32>
      %cst_52 = arith.constant 3.200000e+01 : f32
      %111 = vector.broadcast %cst_52 : f32 to vector<8x1xf32>
      %112 = arith.divf %110, %111 : vector<8x1xf32>
      %113 = vector.broadcast %112 : vector<8x1xf32> to vector<8x32xf32>
      %114 = arith.subf %102, %113 : vector<8x32xf32>
      %115 = arith.mulf %114, %114 : vector<8x32xf32>
      %cst_53 = arith.constant dense<0.000000e+00> : vector<8xf32>
      %116 = vector.multi_reduction <add>, %115, %cst_53 [1] : vector<8x32xf32> to vector<8xf32>
      %117 = vector.shape_cast %116 : vector<8xf32> to vector<8x1xf32>
      %cst_54 = arith.constant 3.200000e+01 : f32
      %118 = vector.broadcast %cst_54 : f32 to vector<8x1xf32>
      %119 = arith.divf %117, %118 : vector<8x1xf32>
      %120 = vector.broadcast %112 : vector<8x1xf32> to vector<8x32xf32>
      %121 = arith.subf %102, %120 : vector<8x32xf32>
      %cst_55 = arith.constant 9.99999996E-13 : f32
      %122 = vector.broadcast %cst_55 : f32 to vector<8x1xf32>
      %123 = arith.addf %119, %122 : vector<8x1xf32>
      %124 = math.rsqrt %123 : vector<8x1xf32>
      %125 = vector.broadcast %124 : vector<8x1xf32> to vector<8x32xf32>
      %126 = arith.mulf %121, %125 : vector<8x32xf32>
      %127 = vector.broadcast %105 : vector<1x32xf32> to vector<8x32xf32>
      %128 = arith.mulf %126, %127 : vector<8x32xf32>
      %129 = vector.broadcast %108 : vector<1x32xf32> to vector<8x32xf32>
      %130 = arith.addf %128, %129 : vector<8x32xf32>
      %131 = arith.truncf %130 : vector<8x32xf32> to vector<8x32xbf16>
      %132 = arith.index_cast %arg21 : i32 to index
      %c0_56 = arith.constant 0 : index
      %c0_57 = arith.constant 0 : index
      %133 = vector.load %arg11[%132, %c0_56, %c0_57] : memref<2x32x64xbf16, #tpu.memory_space<vmem>>, vector<1x32x64xbf16>
      %134 = vector.shape_cast %133 : vector<1x32x64xbf16> to vector<32x64xbf16>
      %cst_58 = arith.constant dense<0.000000e+00> : vector<8x64xf32>
      %135 = tpu.matmul %131, %134, %cst_58 {dimension_numbers = #tpu.dot_dimension_numbers<[1], [0], [0], [1], [0, 0, 1, 1], [], []>} : vector<8x32xbf16>, vector<32x64xbf16>, vector<8x64xf32> -> vector<8x64xf32>
      %136 = arith.index_cast %arg21 : i32 to index
      %c0_59 = arith.constant 0 : index
      %c0_60 = arith.constant 0 : index
      %137 = vector.load %arg12[%136, %c0_59, %c0_60] : memref<2x1x64xf32, #tpu.memory_space<vmem>>, vector<1x1x64xf32>
      %138 = vector.shape_cast %137 : vector<1x1x64xf32> to vector<1x64xf32>
      %139 = vector.broadcast %138 : vector<1x64xf32> to vector<8x64xf32>
      %140 = arith.addf %135, %139 : vector<8x64xf32>
      %cst_61 = arith.constant 5.000000e-01 : f32
      %141 = vector.broadcast %cst_61 : f32 to vector<8x64xf32>
      %142 = arith.mulf %141, %140 : vector<8x64xf32>
      %cst_62 = arith.constant 4.471500e-02 : f32
      %143 = vector.broadcast %cst_62 : f32 to vector<8x64xf32>
      %144 = arith.mulf %143, %140 : vector<8x64xf32>
      %145 = arith.mulf %144, %140 : vector<8x64xf32>
      %146 = arith.mulf %145, %140 : vector<8x64xf32>
      %147 = arith.addf %140, %146 : vector<8x64xf32>
      %cst_63 = arith.constant 0.797884583 : f32
      %148 = vector.broadcast %cst_63 : f32 to vector<8x64xf32>
      %149 = arith.mulf %148, %147 : vector<8x64xf32>
      %150 = math.tanh %149 : vector<8x64xf32>
      %cst_64 = arith.constant 1.000000e+00 : f32
      %151 = vector.broadcast %cst_64 : f32 to vector<8x64xf32>
      %152 = arith.addf %151, %150 : vector<8x64xf32>
      %153 = arith.mulf %142, %152 : vector<8x64xf32>
      %154 = arith.truncf %153 : vector<8x64xf32> to vector<8x64xbf16>
      %155 = arith.index_cast %arg21 : i32 to index
      %c0_65 = arith.constant 0 : index
      %c0_66 = arith.constant 0 : index
      %156 = vector.load %arg13[%155, %c0_65, %c0_66] : memref<2x64x32xbf16, #tpu.memory_space<vmem>>, vector<1x64x32xbf16>
      %157 = vector.shape_cast %156 : vector<1x64x32xbf16> to vector<64x32xbf16>
      %cst_67 = arith.constant dense<0.000000e+00> : vector<8x32xf32>
      %158 = tpu.matmul %154, %157, %cst_67 {dimension_numbers = #tpu.dot_dimension_numbers<[1], [0], [0], [1], [0, 0, 1, 1], [], []>} : vector<8x64xbf16>, vector<64x32xbf16>, vector<8x32xf32> -> vector<8x32xf32>
      %159 = arith.index_cast %arg21 : i32 to index
      %c0_68 = arith.constant 0 : index
      %c0_69 = arith.constant 0 : index
      %160 = vector.load %arg14[%159, %c0_68, %c0_69] : memref<2x1x32xf32, #tpu.memory_space<vmem>>, vector<1x1x32xf32>
      %161 = vector.shape_cast %160 : vector<1x1x32xf32> to vector<1x32xf32>
      %162 = vector.broadcast %161 : vector<1x32xf32> to vector<8x32xf32>
      %163 = arith.addf %158, %162 : vector<8x32xf32>
      %164 = arith.addf %163, %130 : vector<8x32xf32>
      %165 = arith.index_cast %arg21 : i32 to index
      %c0_70 = arith.constant 0 : index
      %c0_71 = arith.constant 0 : index
      %166 = vector.load %arg15[%165, %c0_70, %c0_71] : memref<2x1x32xf32, #tpu.memory_space<vmem>>, vector<1x1x32xf32>
      %167 = vector.shape_cast %166 : vector<1x1x32xf32> to vector<1x32xf32>
      %168 = arith.index_cast %arg21 : i32 to index
      %c0_72 = arith.constant 0 : index
      %c0_73 = arith.constant 0 : index
      %169 = vector.load %arg16[%168, %c0_72, %c0_73] : memref<2x1x32xf32, #tpu.memory_space<vmem>>, vector<1x1x32xf32>
      %170 = vector.shape_cast %169 : vector<1x1x32xf32> to vector<1x32xf32>
      %cst_74 = arith.constant dense<0.000000e+00> : vector<8xf32>
      %171 = vector.multi_reduction <add>, %164, %cst_74 [1] : vector<8x32xf32> to vector<8xf32>
      %172 = vector.shape_cast %171 : vector<8xf32> to vector<8x1xf32>
      %cst_75 = arith.constant 3.200000e+01 : f32
      %173 = vector.broadcast %cst_75 : f32 to vector<8x1xf32>
      %174 = arith.divf %172, %173 : vector<8x1xf32>
      %175 = vector.broadcast %174 : vector<8x1xf32> to vector<8x32xf32>
      %176 = arith.subf %164, %175 : vector<8x32xf32>
      %177 = arith.mulf %176, %176 : vector<8x32xf32>
      %cst_76 = arith.constant dense<0.000000e+00> : vector<8xf32>
      %178 = vector.multi_reduction <add>, %177, %cst_76 [1] : vector<8x32xf32> to vector<8xf32>
      %179 = vector.shape_cast %178 : vector<8xf32> to vector<8x1xf32>
      %cst_77 = arith.constant 3.200000e+01 : f32
      %180 = vector.broadcast %cst_77 : f32 to vector<8x1xf32>
      %181 = arith.divf %179, %180 : vector<8x1xf32>
      %182 = vector.broadcast %174 : vector<8x1xf32> to vector<8x32xf32>
      %183 = arith.subf %164, %182 : vector<8x32xf32>
      %cst_78 = arith.constant 9.99999996E-13 : f32
      %184 = vector.broadcast %cst_78 : f32 to vector<8x1xf32>
      %185 = arith.addf %181, %184 : vector<8x1xf32>
      %186 = math.rsqrt %185 : vector<8x1xf32>
      %187 = vector.broadcast %186 : vector<8x1xf32> to vector<8x32xf32>
      %188 = arith.mulf %183, %187 : vector<8x32xf32>
      %189 = vector.broadcast %167 : vector<1x32xf32> to vector<8x32xf32>
      %190 = arith.mulf %188, %189 : vector<8x32xf32>
      %191 = vector.broadcast %170 : vector<1x32xf32> to vector<8x32xf32>
      %192 = arith.addf %190, %191 : vector<8x32xf32>
      scf.yield %192 : vector<8x32xf32>
    }
    %c2_i32_13 = arith.constant 2 : i32
    %30 = arith.truncf %29 : vector<8x32xf32> to vector<8x32xbf16>
    %c0_14 = arith.constant 0 : index
    %c0_15 = arith.constant 0 : index
    %31 = vector.load %arg17[%c0_14, %c0_15] : memref<32x128xbf16, #tpu.memory_space<vmem>>, vector<32x128xbf16>
    %cst_16 = arith.constant dense<0.000000e+00> : vector<8x128xf32>
    %32 = tpu.matmul %30, %31, %cst_16 {dimension_numbers = #tpu.dot_dimension_numbers<[1], [0], [0], [1], [0, 0, 1, 1], [], []>} : vector<8x32xbf16>, vector<32x128xbf16>, vector<8x128xf32> -> vector<8x128xf32>
    %c0_17 = arith.constant 0 : index
    %c0_18 = arith.constant 0 : index
    %33 = vector.load %arg18[%c0_17, %c0_18] : memref<1x128xf32, #tpu.memory_space<vmem>>, vector<1x128xf32>
    %34 = vector.broadcast %33 : vector<1x128xf32> to vector<8x128xf32>
    %35 = arith.addf %32, %34 : vector<8x128xf32>
    %c0_19 = arith.constant 0 : index
    %c0_20 = arith.constant 0 : index
    %c0_21 = arith.constant 0 : index
    %36 = vector.load %arg19[%c0_19, %c0_20, %c0_21] : memref<1x8x128xf32, #tpu.memory_space<vmem>>, vector<1x8x128xf32>
    %37 = vector.shape_cast %36 : vector<1x8x128xf32> to vector<8x128xf32>
    %38 = vector.shape_cast %35 : vector<8x128xf32> to vector<1x8x128xf32>
    tpu.vector_store %arg19[%c0_19, %c0_20, %c0_21], %38 {strides = array<i32>} : memref<1x8x128xf32, #tpu.memory_space<vmem>>, vector<1x8x128xf32>,
    return
  }
  func.func @transform_0(%arg0: i32) -> (i32, i32, i32) {
    %c0_i32 = arith.constant 0 : i32
    %c0_i32_0 = arith.constant 0 : i32
    %c0_i32_1 = arith.constant 0 : i32
    return %arg0, %c0_i32, %c0_i32_0 : i32, i32, i32
  }
  func.func @transform_1(%arg0: i32) -> (i32, i32, i32) {
    %c0_i32 = arith.constant 0 : i32
    %c0_i32_0 = arith.constant 0 : i32
    %c0_i32_1 = arith.constant 0 : i32
    return %arg0, %c0_i32, %c0_i32_0 : i32, i32, i32
  }
  func.func @transform_2(%arg0: i32) -> (i32, i32) {
    %c0_i32 = arith.constant 0 : i32
    %c0_i32_0 = arith.constant 0 : i32
    %c0_i32_1 = arith.constant 0 : i32
    return %c0_i32, %c0_i32_0 : i32, i32
  }
  func.func @transform_3(%arg0: i32) -> (i32, i32) {
    %c0_i32 = arith.constant 0 : i32
    %c0_i32_0 = arith.constant 0 : i32
    %c0_i32_1 = arith.constant 0 : i32
    return %c0_i32, %c0_i32_0 : i32, i32
  }
  func.func @transform_4(%arg0: i32) -> (i32, i32, i32) {
    %c0_i32 = arith.constant 0 : i32
    %c0_i32_0 = arith.constant 0 : i32
    %c0_i32_1 = arith.constant 0 : i32
    %c0_i32_2 = arith.constant 0 : i32
    return %c0_i32, %c0_i32_0, %c0_i32_1 : i32, i32, i32
  }
  func.func @transform_5(%arg0: i32) -> (i32, i32, i32) {
    %c0_i32 = arith.constant 0 : i32
    %c0_i32_0 = arith.constant 0 : i32
    %c0_i32_1 = arith.constant 0 : i32
    %c0_i32_2 = arith.constant 0 : i32
    return %c0_i32, %c0_i32_0, %c0_i32_1 : i32, i32, i32
  }
  func.func @transform_6(%arg0: i32) -> (i32, i32, i32) {
    %c0_i32 = arith.constant 0 : i32
    %c0_i32_0 = arith.constant 0 : i32
    %c0_i32_1 = arith.constant 0 : i32
    %c0_i32_2 = arith.constant 0 : i32
    return %c0_i32, %c0_i32_0, %c0_i32_1 : i32, i32, i32
  }
  func.func @transform_7(%arg0: i32) -> (i32, i32, i32) {
    %c0_i32 = arith.constant 0 : i32
    %c0_i32_0 = arith.constant 0 : i32
    %c0_i32_1 = arith.constant 0 : i32
    %c0_i32_2 = arith.constant 0 : i32
    return %c0_i32, %c0_i32_0, %c0_i32_1 : i32, i32, i32
  }
  func.func @transform_8(%arg0: i32) -> (i32, i32, i32) {
    %c0_i32 = arith.constant 0 : i32
    %c0_i32_0 = arith.constant 0 : i32
    %c0_i32_1 = arith.constant 0 : i32
    %c0_i32_2 = arith.constant 0 : i32
    return %c0_i32, %c0_i32_0, %c0_i32_1 : i32, i32, i32
  }
  func.func @transform_9(%arg0: i32) -> (i32, i32, i32) {
    %c0_i32 = arith.constant 0 : i32
    %c0_i32_0 = arith.constant 0 : i32
    %c0_i32_1 = arith.constant 0 : i32
    %c0_i32_2 = arith.constant 0 : i32
    return %c0_i32, %c0_i32_0, %c0_i32_1 : i32, i32, i32
  }
  func.func @transform_10(%arg0: i32) -> (i32, i32, i32) {
    %c0_i32 = arith.constant 0 : i32
    %c0_i32_0 = arith.constant 0 : i32
    %c0_i32_1 = arith.constant 0 : i32
    %c0_i32_2 = arith.constant 0 : i32
    return %c0_i32, %c0_i32_0, %c0_i32_1 : i32, i32, i32
  }
  func.func @transform_11(%arg0: i32) -> (i32, i32, i32) {
    %c0_i32 = arith.constant 0 : i32
    %c0_i32_0 = arith.constant 0 : i32
    %c0_i32_1 = arith.constant 0 : i32
    %c0_i32_2 = arith.constant 0 : i32
    return %c0_i32, %c0_i32_0, %c0_i32_1 : i32, i32, i32
  }
  func.func @transform_12(%arg0: i32) -> (i32, i32, i32) {
    %c0_i32 = arith.constant 0 : i32
    %c0_i32_0 = arith.constant 0 : i32
    %c0_i32_1 = arith.constant 0 : i32
    %c0_i32_2 = arith.constant 0 : i32
    return %c0_i32, %c0_i32_0, %c0_i32_1 : i32, i32, i32
  }
  func.func @transform_13(%arg0: i32) -> (i32, i32, i32) {
    %c0_i32 = arith.constant 0 : i32
    %c0_i32_0 = arith.constant 0 : i32
    %c0_i32_1 = arith.constant 0 : i32
    %c0_i32_2 = arith.constant 0 : i32
    return %c0_i32, %c0_i32_0, %c0_i32_1 : i32, i32, i32
  }
  func.func @transform_14(%arg0: i32) -> (i32, i32, i32) {
    %c0_i32 = arith.constant 0 : i32
    %c0_i32_0 = arith.constant 0 : i32
    %c0_i32_1 = arith.constant 0 : i32
    %c0_i32_2 = arith.constant 0 : i32
    return %c0_i32, %c0_i32_0, %c0_i32_1 : i32, i32, i32
  }
  func.func @transform_15(%arg0: i32) -> (i32, i32, i32) {
    %c0_i32 = arith.constant 0 : i32
    %c0_i32_0 = arith.constant 0 : i32
    %c0_i32_1 = arith.constant 0 : i32
    %c0_i32_2 = arith.constant 0 : i32
    return %c0_i32, %c0_i32_0, %c0_i32_1 : i32, i32, i32
  }
  func.func @transform_16(%arg0: i32) -> (i32, i32) {
    %c0_i32 = arith.constant 0 : i32
    %c0_i32_0 = arith.constant 0 : i32
    %c0_i32_1 = arith.constant 0 : i32
    return %c0_i32, %c0_i32_0 : i32, i32
  }
  func.func @transform_17(%arg0: i32) -> (i32, i32) {
    %c0_i32 = arith.constant 0 : i32
    %c0_i32_0 = arith.constant 0 : i32
    %c0_i32_1 = arith.constant 0 : i32
    return %c0_i32, %c0_i32_0 : i32, i32
  }
  func.func @transform_18(%arg0: i32) -> (i32, i32, i32) {
    %c0_i32 = arith.constant 0 : i32
    %c0_i32_0 = arith.constant 0 : i32
    %c0_i32_1 = arith.constant 0 : i32
    return %arg0, %c0_i32, %c0_i32_0 : i32, i32, i32
  }
}

</mosaic_0001>

<llo_original>
// kernel: srl_forward.1
$region0: #{srl_forward.1}
  #allocation0 [shape = 'u32[]', space=smem, size = 0x4, offset = 0x4, fixed_abs, tag = 'smem constant byte address 0x4 - core index']
  #allocation1 [shape = 'u32[144,128]{1,0:T(1,128)}', space=vmem, size = 0x12000, scoped, tag = 'internal scratch']
  #allocation2 [shape = 'f32[8,32]{1,0:T(8,128)}', space=vmem, size = 0x1000, scoped, tag = 'scratch operand']
  %s0 = inlined_call_operand.vmem [shape: f32[2,8,32], index: 0, kind: input, shape index: {}]
  %s1 = inlined_call_operand.vmem [shape: f32[2,1,8], index: 1, kind: input, shape index: {}]
  %s2 = inlined_call_operand.vmem [shape: f32[1,32], index: 2, kind: input, shape index: {}]
  %s3 = inlined_call_operand.vmem [shape: f32[1,32], index: 3, kind: input, shape index: {}]
  %s4 = inlined_call_operand.vmem [shape: bf16[2,32,96], index: 4, kind: input, shape index: {}]
  %s5 = inlined_call_operand.vmem [shape: f32[2,1,96], index: 5, kind: input, shape index: {}]
  %s6 = inlined_call_operand.vmem [shape: bf16[2,32,32], index: 6, kind: input, shape index: {}]
  %s7 = inlined_call_operand.vmem [shape: f32[2,1,32], index: 7, kind: input, shape index: {}]
  %s8 = inlined_call_operand.vmem [shape: f32[2,1,32], index: 8, kind: input, shape index: {}]
  %s9 = inlined_call_operand.vmem [shape: f32[2,1,32], index: 9, kind: input, shape index: {}]
  %s10 = inlined_call_operand.vmem [shape: bf16[2,32,64], index: 10, kind: input, shape index: {}]
  %s11 = inlined_call_operand.vmem [shape: f32[2,1,64], index: 11, kind: input, shape index: {}]
  %s12 = inlined_call_operand.vmem [shape: bf16[2,64,32], index: 12, kind: input, shape index: {}]
  %s13 = inlined_call_operand.vmem [shape: f32[2,1,32], index: 13, kind: input, shape index: {}]
  %s14 = inlined_call_operand.vmem [shape: f32[2,1,32], index: 14, kind: input, shape index: {}]
  %s15 = inlined_call_operand.vmem [shape: f32[2,1,32], index: 15, kind: input, shape index: {}]
  %s16 = inlined_call_operand.vmem [shape: bf16[32,128], index: 16, kind: input, shape index: {}]
  %s17 = inlined_call_operand.vmem [shape: f32[1,128], index: 17, kind: input, shape index: {}]
  %s18 = inlined_call_operand.hbm [shape: f32[2,8,128], index: 18, kind: output, shape index: {}]
  %s19 = sld [smem:[#allocation0]]
  $region112: #{srl_forward.1} parent=0
    _
  %s21 = ssub.s32 1, %s19
  %s22 = scalar_select 0, %s21, %s19
  $region1: #{srl_forward.1} parent=0
    #allocation3 [shape = 'u8[8192]{0}', space=vmem, size = 0x2000, scoped, tag = 'output window, operand 0']
    #allocation4 [shape = 's32[2]{0}', space=sflag, size = 0x8, scoped, tag = 'scoped memory for srl_forward.1']
    %23 = vsyncpa [#allocation4], 0
    %s24 = scalar_lea.sflag [#allocation4], 1
    %25 = vsyncpa %s24, 0
    loop: start=0, step=1, limit=4
    $region2: #{srl_forward.1} parent=1 // loop_pre_header
      _
    $region3: #{srl_forward.1} parent=1 // loop_header
      %s27 = sphi 0, %s31
      %p28 = scmp.ge.s32.totalorder %s27, 4
      %s37 = sphi 0, %s39
      %s40 = sphi 0, %s37
      %s41 = sphi 0, %s40
      %s57 = sphi 0, %s41
      %s63 = sphi 0, %s65
      %s66 = sphi 0, %s63
      %s67 = sphi 0, %s66
      %s83 = sphi 0, %s67
      %s87 = sphi 0, %s87
      %s89 = sphi 0, %s87
      %s90 = sphi 0, %s89
      %s104 = sphi 0, %s90
      %s108 = sphi 0, %s108
      %s110 = sphi 0, %s108
      %s111 = sphi 0, %s110
      %s125 = sphi 0, %s111
      %s129 = sphi 0, %s129
      %s131 = sphi 0, %s129
      %s132 = sphi 0, %s131
      %s146 = sphi 0, %s132
      %s150 = sphi 0, %s150
      %s152 = sphi 0, %s150
      %s153 = sphi 0, %s152
      %s167 = sphi 0, %s153
      %s171 = sphi 0, %s171
      %s173 = sphi 0, %s171
      %s174 = sphi 0, %s173
      %s188 = sphi 0, %s174
      %s192 = sphi 0, %s192
      %s194 = sphi 0, %s192
      %s195 = sphi 0, %s194
      %s209 = sphi 0, %s195
      %s213 = sphi 0, %s213
      %s215 = sphi 0, %s213
      %s216 = sphi 0, %s215
      %s230 = sphi 0, %s216
      %s234 = sphi 0, %s234
      %s236 = sphi 0, %s234
      %s237 = sphi 0, %s236
      %s251 = sphi 0, %s237
      %s255 = sphi 0, %s255
      %s257 = sphi 0, %s255
      %s258 = sphi 0, %s257
      %s272 = sphi 0, %s258
      %s276 = sphi 0, %s276
      %s278 = sphi 0, %s276
      %s279 = sphi 0, %s278
      %s293 = sphi 0, %s279
      %s297 = sphi 0, %s297
      %s299 = sphi 0, %s297
      %s300 = sphi 0, %s299
      %s314 = sphi 0, %s300
      %s318 = sphi 0, %s318
      %s320 = sphi 0, %s318
      %s321 = sphi 0, %s320
      %s335 = sphi 0, %s321
      %s339 = sphi 0, %s339
      %s341 = sphi 0, %s339
      %s342 = sphi 0, %s341
      %s356 = sphi 0, %s342
      %s360 = sphi 0, %s360
      %s362 = sphi 0, %s360
      %s363 = sphi 0, %s362
      %s377 = sphi 0, %s363
      %s381 = sphi 0, %s381
      %s383 = sphi 0, %s381
      %s384 = sphi 0, %s383
      %s398 = sphi 0, %s384
      %s402 = sphi 0, %s402
      %s404 = sphi 0, %s402
      %s405 = sphi 0, %s404
      %s419 = sphi 0, %s405
      %s425 = sphi 0, %s427
      %s428 = sphi 0, %s425
      %s429 = sphi 0, %s428
      %s445 = sphi 0, %s429
    $region4: #{srl_forward.1} parent=1 // loop_header_branch
      %30 = sbr.rel (%p28) target = $region8
    $region5: #{srl_forward.1} parent=1 // loop_body
      %s32 = ssub.s32 %s27, 1
      %s33 = ssub.s32 %s27, 2
      %s34 = sadd.s32 %s27, 1
      %s35 = ssub.s32 %s27, %s34
      %p36 = scmp.eq.s32.totalorder %s35, 0
      %s38 = sadd.s32 %s37, 1
      %s39 = scalar_select %p36, %s37, %s38
      %p42 = pneg %p36
      %p43 = scmp.eq.s32.totalorder %s27, 1
      %p44 = por %p42, %p43
      %p45 = scmp.ne.s32.totalorder %s37, %s40
      %p46 = scmp.eq.s32.totalorder %s27, 0
      %p47 = por %p45, %p46
      %p48 = scmp.ne.s32.totalorder %s37, %s40
      %p49 = scmp.eq.s32.totalorder %s32, 1
      %p50 = por %p48, %p49
      %p51 = scmp.ne.s32.totalorder %s40, %s41
      %p52 = scmp.eq.s32.totalorder %s32, 0
      %p53 = por %p51, %p52
      %p54 = scmp.ne.s32.totalorder %s40, %s41
      %p55 = scmp.eq.s32.totalorder %s33, 1
      %p56 = por %p54, %p55
      %p58 = scmp.ne.s32.totalorder %s41, %s57
      %p59 = scmp.eq.s32.totalorder %s33, 0
      %p60 = por %p58, %p59
      %s61 = ssub.s32 %s27, %s34
      %p62 = scmp.eq.s32.totalorder %s61, 0
      %s64 = sadd.s32 %s63, 1
      %s65 = scalar_select %p62, %s63, %s64
      %p68 = pneg %p62
      %p69 = scmp.eq.s32.totalorder %s27, 1
      %p70 = por %p68, %p69
      %p71 = scmp.ne.s32.totalorder %s63, %s66
      %p72 = scmp.eq.s32.totalorder %s27, 0
      %p73 = por %p71, %p72
      %p74 = scmp.ne.s32.totalorder %s63, %s66
      %p75 = scmp.eq.s32.totalorder %s32, 1
      %p76 = por %p74, %p75
      %p77 = scmp.ne.s32.totalorder %s66, %s67
      %p78 = scmp.eq.s32.totalorder %s32, 0
      %p79 = por %p77, %p78
      %p80 = scmp.ne.s32.totalorder %s66, %s67
      %p81 = scmp.eq.s32.totalorder %s33, 1
      %p82 = por %p80, %p81
      %p84 = scmp.ne.s32.totalorder %s67, %s83
      %p85 = scmp.eq.s32.totalorder %s33, 0
      %p86 = por %p84, %p85
      %s88 = sadd.s32 %s87, 1
      %p91 = scmp.eq.s32.totalorder %s27, 1
      %p92 = scmp.ne.s32.totalorder %s87, %s89
      %p93 = scmp.eq.s32.totalorder %s27, 0
      %p94 = por %p92, %p93
      %p95 = scmp.ne.s32.totalorder %s87, %s89
      %p96 = scmp.eq.s32.totalorder %s32, 1
      %p97 = por %p95, %p96
      %p98 = scmp.ne.s32.totalorder %s89, %s90
      %p99 = scmp.eq.s32.totalorder %s32, 0
      %p100 = por %p98, %p99
      %p101 = scmp.ne.s32.totalorder %s89, %s90
      %p102 = scmp.eq.s32.totalorder %s33, 1
      %p103 = por %p101, %p102
      %p105 = scmp.ne.s32.totalorder %s90, %s104
      %p106 = scmp.eq.s32.totalorder %s33, 0
      %p107 = por %p105, %p106
      %s109 = sadd.s32 %s108, 1
      %p112 = scmp.eq.s32.totalorder %s27, 1
      %p113 = scmp.ne.s32.totalorder %s108, %s110
      %p114 = scmp.eq.s32.totalorder %s27, 0
      %p115 = por %p113, %p114
      %p116 = scmp.ne.s32.totalorder %s108, %s110
      %p117 = scmp.eq.s32.totalorder %s32, 1
      %p118 = por %p116, %p117
      %p119 = scmp.ne.s32.totalorder %s110, %s111
      %p120 = scmp.eq.s32.totalorder %s32, 0
      %p121 = por %p119, %p120
      %p122 = scmp.ne.s32.totalorder %s110, %s111
      %p123 = scmp.eq.s32.totalorder %s33, 1
      %p124 = por %p122, %p123
      %p126 = scmp.ne.s32.totalorder %s111, %s125
      %p127 = scmp.eq.s32.totalorder %s33, 0
      %p128 = por %p126, %p127
      %s130 = sadd.s32 %s129, 1
      %p133 = scmp.eq.s32.totalorder %s27, 1
      %p134 = scmp.ne.s32.totalorder %s129, %s131
      %p135 = scmp.eq.s32.totalorder %s27, 0
      %p136 = por %p134, %p135
      %p137 = scmp.ne.s32.totalorder %s129, %s131
      %p138 = scmp.eq.s32.totalorder %s32, 1
      %p139 = por %p137, %p138
      %p140 = scmp.ne.s32.totalorder %s131, %s132
      %p141 = scmp.eq.s32.totalorder %s32, 0
      %p142 = por %p140, %p141
      %p143 = scmp.ne.s32.totalorder %s131, %s132
      %p144 = scmp.eq.s32.totalorder %s33, 1
      %p145 = por %p143, %p144
      %p147 = scmp.ne.s32.totalorder %s132, %s146
      %p148 = scmp.eq.s32.totalorder %s33, 0
      %p149 = por %p147, %p148
      %s151 = sadd.s32 %s150, 1
      %p154 = scmp.eq.s32.totalorder %s27, 1
      %p155 = scmp.ne.s32.totalorder %s150, %s152
      %p156 = scmp.eq.s32.totalorder %s27, 0
      %p157 = por %p155, %p156
      %p158 = scmp.ne.s32.totalorder %s150, %s152
      %p159 = scmp.eq.s32.totalorder %s32, 1
      %p160 = por %p158, %p159
      %p161 = scmp.ne.s32.totalorder %s152, %s153
      %p162 = scmp.eq.s32.totalorder %s32, 0
      %p163 = por %p161, %p162
      %p164 = scmp.ne.s32.totalorder %s152, %s153
      %p165 = scmp.eq.s32.totalorder %s33, 1
      %p166 = por %p164, %p165
      %p168 = scmp.ne.s32.totalorder %s153, %s167
      %p169 = scmp.eq.s32.totalorder %s33, 0
      %p170 = por %p168, %p169
      %s172 = sadd.s32 %s171, 1
      %p175 = scmp.eq.s32.totalorder %s27, 1
      %p176 = scmp.ne.s32.totalorder %s171, %s173
      %p177 = scmp.eq.s32.totalorder %s27, 0
      %p178 = por %p176, %p177
      %p179 = scmp.ne.s32.totalorder %s171, %s173
      %p180 = scmp.eq.s32.totalorder %s32, 1
      %p181 = por %p179, %p180
      %p182 = scmp.ne.s32.totalorder %s173, %s174
      %p183 = scmp.eq.s32.totalorder %s32, 0
      %p184 = por %p182, %p183
      %p185 = scmp.ne.s32.totalorder %s173, %s174
      %p186 = scmp.eq.s32.totalorder %s33, 1
      %p187 = por %p185, %p186
      %p189 = scmp.ne.s32.totalorder %s174, %s188
      %p190 = scmp.eq.s32.totalorder %s33, 0
      %p191 = por %p189, %p190
      %s193 = sadd.s32 %s192, 1
      %p196 = scmp.eq.s32.totalorder %s27, 1
      %p197 = scmp.ne.s32.totalorder %s192, %s194
      %p198 = scmp.eq.s32.totalorder %s27, 0
      %p199 = por %p197, %p198
      %p200 = scmp.ne.s32.totalorder %s192, %s194
      %p201 = scmp.eq.s32.totalorder %s32, 1
      %p202 = por %p200, %p201
      %p203 = scmp.ne.s32.totalorder %s194, %s195
      %p204 = scmp.eq.s32.totalorder %s32, 0
      %p205 = por %p203, %p204
      %p206 = scmp.ne.s32.totalorder %s194, %s195
      %p207 = scmp.eq.s32.totalorder %s33, 1
      %p208 = por %p206, %p207
      %p210 = scmp.ne.s32.totalorder %s195, %s209
      %p211 = scmp.eq.s32.totalorder %s33, 0
      %p212 = por %p210, %p211
      %s214 = sadd.s32 %s213, 1
      %p217 = scmp.eq.s32.totalorder %s27, 1
      %p218 = scmp.ne.s32.totalorder %s213, %s215
      %p219 = scmp.eq.s32.totalorder %s27, 0
      %p220 = por %p218, %p219
      %p221 = scmp.ne.s32.totalorder %s213, %s215
      %p222 = scmp.eq.s32.totalorder %s32, 1
      %p223 = por %p221, %p222
      %p224 = scmp.ne.s32.totalorder %s215, %s216
      %p225 = scmp.eq.s32.totalorder %s32, 0
      %p226 = por %p224, %p225
      %p227 = scmp.ne.s32.totalorder %s215, %s216
      %p228 = scmp.eq.s32.totalorder %s33, 1
      %p229 = por %p227, %p228
      %p231 = scmp.ne.s32.totalorder %s216, %s230
      %p232 = scmp.eq.s32.totalorder %s33, 0
      %p233 = por %p231, %p232
      %s235 = sadd.s32 %s234, 1
      %p238 = scmp.eq.s32.totalorder %s27, 1
      %p239 = scmp.ne.s32.totalorder %s234, %s236
      %p240 = scmp.eq.s32.totalorder %s27, 0
      %p241 = por %p239, %p240
      %p242 = scmp.ne.s32.totalorder %s234, %s236
      %p243 = scmp.eq.s32.totalorder %s32, 1
      %p244 = por %p242, %p243
      %p245 = scmp.ne.s32.totalorder %s236, %s237
      %p246 = scmp.eq.s32.totalorder %s32, 0
      %p247 = por %p245, %p246
      %p248 = scmp.ne.s32.totalorder %s236, %s237
      %p249 = scmp.eq.s32.totalorder %s33, 1
      %p250 = por %p248, %p249
      %p252 = scmp.ne.s32.totalorder %s237, %s251
      %p253 = scmp.eq.s32.totalorder %s33, 0
      %p254 = por %p252, %p253
      %s256 = sadd.s32 %s255, 1
      %p259 = scmp.eq.s32.totalorder %s27, 1
      %p260 = scmp.ne.s32.totalorder %s255, %s257
      %p261 = scmp.eq.s32.totalorder %s27, 0
      %p262 = por %p260, %p261
      %p263 = scmp.ne.s32.totalorder %s255, %s257
      %p264 = scmp.eq.s32.totalorder %s32, 1
      %p265 = por %p263, %p264
      %p266 = scmp.ne.s32.totalorder %s257, %s258
      %p267 = scmp.eq.s32.totalorder %s32, 0
      %p268 = por %p266, %p267
      %p269 = scmp.ne.s32.totalorder %s257, %s258
      %p270 = scmp.eq.s32.totalorder %s33, 1
      %p271 = por %p269, %p270
      %p273 = scmp.ne.s32.totalorder %s258, %s272
      %p274 = scmp.eq.s32.totalorder %s33, 0
      %p275 = por %p273, %p274
      %s277 = sadd.s32 %s276, 1
      %p280 = scmp.eq.s32.totalorder %s27, 1
      %p281 = scmp.ne.s32.totalorder %s276, %s278
      %p282 = scmp.eq.s32.totalorder %s27, 0
      %p283 = por %p281, %p282
      %p284 = scmp.ne.s32.totalorder %s276, %s278
      %p285 = scmp.eq.s32.totalorder %s32, 1
      %p286 = por %p284, %p285
      %p287 = scmp.ne.s32.totalorder %s278, %s279
      %p288 = scmp.eq.s32.totalorder %s32, 0
      %p289 = por %p287, %p288
      %p290 = scmp.ne.s32.totalorder %s278, %s279
      %p291 = scmp.eq.s32.totalorder %s33, 1
      %p292 = por %p290, %p291
      %p294 = scmp.ne.s32.totalorder %s279, %s293
      %p295 = scmp.eq.s32.totalorder %s33, 0
      %p296 = por %p294, %p295
      %s298 = sadd.s32 %s297, 1
      %p301 = scmp.eq.s32.totalorder %s27, 1
      %p302 = scmp.ne.s32.totalorder %s297, %s299
      %p303 = scmp.eq.s32.totalorder %s27, 0
      %p304 = por %p302, %p303
      %p305 = scmp.ne.s32.totalorder %s297, %s299
      %p306 = scmp.eq.s32.totalorder %s32, 1
      %p307 = por %p305, %p306
      %p308 = scmp.ne.s32.totalorder %s299, %s300
      %p309 = scmp.eq.s32.totalorder %s32, 0
      %p310 = por %p308, %p309
      %p311 = scmp.ne.s32.totalorder %s299, %s300
      %p312 = scmp.eq.s32.totalorder %s33, 1
      %p313 = por %p311, %p312
      %p315 = scmp.ne.s32.totalorder %s300, %s314
      %p316 = scmp.eq.s32.totalorder %s33, 0
      %p317 = por %p315, %p316
      %s319 = sadd.s32 %s318, 1
      %p322 = scmp.eq.s32.totalorder %s27, 1
      %p323 = scmp.ne.s32.totalorder %s318, %s320
      %p324 = scmp.eq.s32.totalorder %s27, 0
      %p325 = por %p323, %p324
      %p326 = scmp.ne.s32.totalorder %s318, %s320
      %p327 = scmp.eq.s32.totalorder %s32, 1
      %p328 = por %p326, %p327
      %p329 = scmp.ne.s32.totalorder %s320, %s321
      %p330 = scmp.eq.s32.totalorder %s32, 0
      %p331 = por %p329, %p330
      %p332 = scmp.ne.s32.totalorder %s320, %s321
      %p333 = scmp.eq.s32.totalorder %s33, 1
      %p334 = por %p332, %p333
      %p336 = scmp.ne.s32.totalorder %s321, %s335
      %p337 = scmp.eq.s32.totalorder %s33, 0
      %p338 = por %p336, %p337
      %s340 = sadd.s32 %s339, 1
      %p343 = scmp.eq.s32.totalorder %s27, 1
      %p344 = scmp.ne.s32.totalorder %s339, %s341
      %p345 = scmp.eq.s32.totalorder %s27, 0
      %p346 = por %p344, %p345
      %p347 = scmp.ne.s32.totalorder %s339, %s341
      %p348 = scmp.eq.s32.totalorder %s32, 1
      %p349 = por %p347, %p348
      %p350 = scmp.ne.s32.totalorder %s341, %s342
      %p351 = scmp.eq.s32.totalorder %s32, 0
      %p352 = por %p350, %p351
      %p353 = scmp.ne.s32.totalorder %s341, %s342
      %p354 = scmp.eq.s32.totalorder %s33, 1
      %p355 = por %p353, %p354
      %p357 = scmp.ne.s32.totalorder %s342, %s356
      %p358 = scmp.eq.s32.totalorder %s33, 0
      %p359 = por %p357, %p358
      %s361 = sadd.s32 %s360, 1
      %p364 = scmp.eq.s32.totalorder %s27, 1
      %p365 = scmp.ne.s32.totalorder %s360, %s362
      %p366 = scmp.eq.s32.totalorder %s27, 0
      %p367 = por %p365, %p366
      %p368 = scmp.ne.s32.totalorder %s360, %s362
      %p369 = scmp.eq.s32.totalorder %s32, 1
      %p370 = por %p368, %p369
      %p371 = scmp.ne.s32.totalorder %s362, %s363
      %p372 = scmp.eq.s32.totalorder %s32, 0
      %p373 = por %p371, %p372
      %p374 = scmp.ne.s32.totalorder %s362, %s363
      %p375 = scmp.eq.s32.totalorder %s33, 1
      %p376 = por %p374, %p375
      %p378 = scmp.ne.s32.totalorder %s363, %s377
      %p379 = scmp.eq.s32.totalorder %s33, 0
      %p380 = por %p378, %p379
      %s382 = sadd.s32 %s381, 1
      %p385 = scmp.eq.s32.totalorder %s27, 1
      %p386 = scmp.ne.s32.totalorder %s381, %s383
      %p387 = scmp.eq.s32.totalorder %s27, 0
      %p388 = por %p386, %p387
      %p389 = scmp.ne.s32.totalorder %s381, %s383
      %p390 = scmp.eq.s32.totalorder %s32, 1
      %p391 = por %p389, %p390
      %p392 = scmp.ne.s32.totalorder %s383, %s384
      %p393 = scmp.eq.s32.totalorder %s32, 0
      %p394 = por %p392, %p393
      %p395 = scmp.ne.s32.totalorder %s383, %s384
      %p396 = scmp.eq.s32.totalorder %s33, 1
      %p397 = por %p395, %p396
      %p399 = scmp.ne.s32.totalorder %s384, %s398
      %p400 = scmp.eq.s32.totalorder %s33, 0
      %p401 = por %p399, %p400
      %s403 = sadd.s32 %s402, 1
      %p406 = scmp.eq.s32.totalorder %s27, 1
      %p407 = scmp.ne.s32.totalorder %s402, %s404
      %p408 = scmp.eq.s32.totalorder %s27, 0
      %p409 = por %p407, %p408
      %p410 = scmp.ne.s32.totalorder %s402, %s404
      %p411 = scmp.eq.s32.totalorder %s32, 1
      %p412 = por %p410, %p411
      %p413 = scmp.ne.s32.totalorder %s404, %s405
      %p414 = scmp.eq.s32.totalorder %s32, 0
      %p415 = por %p413, %p414
      %p416 = scmp.ne.s32.totalorder %s404, %s405
      %p417 = scmp.eq.s32.totalorder %s33, 1
      %p418 = por %p416, %p417
      %p420 = scmp.ne.s32.totalorder %s405, %s419
      %p421 = scmp.eq.s32.totalorder %s33, 0
      %p422 = por %p420, %p421
      %s423 = ssub.s32 %s27, %s34
      %p424 = scmp.eq.s32.totalorder %s423, 0
      %s426 = sadd.s32 %s425, 1
      %s427 = scalar_select %p424, %s425, %s426
      %p430 = pneg %p424
      %p431 = scmp.eq.s32.totalorder %s27, 1
      %p432 = por %p430, %p431
      %p433 = scmp.ne.s32.totalorder %s425, %s428
      %p434 = scmp.eq.s32.totalorder %s27, 0
      %p435 = por %p433, %p434
      %p436 = scmp.ne.s32.totalorder %s425, %s428
      %p437 = scmp.eq.s32.totalorder %s32, 1
      %p438 = por %p436, %p437
      %p439 = scmp.ne.s32.totalorder %s428, %s429
      %p440 = scmp.eq.s32.totalorder %s32, 0
      %p441 = por %p439, %p440
      %p442 = scmp.ne.s32.totalorder %s428, %s429
      %p443 = scmp.eq.s32.totalorder %s33, 1
      %p444 = por %p442, %p443
      %p446 = scmp.ne.s32.totalorder %s429, %s445
      %p447 = scmp.eq.s32.totalorder %s33, 0
      %p448 = por %p446, %p447
      %p449 = scmp.le.s32.totalorder 1, %s27
      %p450 = scmp.lt.s32.totalorder %s27, 3
      %p451 = pnand %p449, %p450
      %p452 = pneg %p451
      // Predicated region
      $region9: #{srl_forward.1} parent=5 // pred_check
        _
      $region10: #{srl_forward.1} parent=5 // pred_check_branch
        %454 = sbr.rel (%p451) target = $region12
      $region11: #{srl_forward.1} parent=5 // pred_region
        %s455 = ssub.s32 %s27, 1
        // Predicated region
        $region13: #{srl_forward.1} parent=11 // pred_check
          %p456 = pneg %p100
        $region14: #{srl_forward.1} parent=11 // pred_check_branch
          %458 = sbr.rel (%p456) target = $region16
        $region15: #{srl_forward.1} parent=11 // pred_region
          _
        $region16: #{srl_forward.1} parent=11 // pred_fallthru
          _
        // Predicated region
        $region17: #{srl_forward.1} parent=11 // pred_check
          %p459 = pneg %p121
        $region18: #{srl_forward.1} parent=11 // pred_check_branch
          %461 = sbr.rel (%p459) target = $region20
        $region19: #{srl_forward.1} parent=11 // pred_region
          _
        $region20: #{srl_forward.1} parent=11 // pred_fallthru
          _
        // Predicated region
        $region21: #{srl_forward.1} parent=11 // pred_check
          %p462 = pneg %p142
        $region22: #{srl_forward.1} parent=11 // pred_check_branch
          %464 = sbr.rel (%p462) target = $region24
        $region23: #{srl_forward.1} parent=11 // pred_region
          _
        $region24: #{srl_forward.1} parent=11 // pred_fallthru
          _
        // Predicated region
        $region25: #{srl_forward.1} parent=11 // pred_check
          %p465 = pneg %p163
        $region26: #{srl_forward.1} parent=11 // pred_check_branch
          %467 = sbr.rel (%p465) target = $region28
        $region27: #{srl_forward.1} parent=11 // pred_region
          _
        $region28: #{srl_forward.1} parent=11 // pred_fallthru
          _
        // Predicated region
        $region29: #{srl_forward.1} parent=11 // pred_check
          %p468 = pneg %p184
        $region30: #{srl_forward.1} parent=11 // pred_check_branch
          %470 = sbr.rel (%p468) target = $region32
        $region31: #{srl_forward.1} parent=11 // pred_region
          _
        $region32: #{srl_forward.1} parent=11 // pred_fallthru
          _
        // Predicated region
        $region33: #{srl_forward.1} parent=11 // pred_check
          %p471 = pneg %p205
        $region34: #{srl_forward.1} parent=11 // pred_check_branch
          %473 = sbr.rel (%p471) target = $region36
        $region35: #{srl_forward.1} parent=11 // pred_region
          _
        $region36: #{srl_forward.1} parent=11 // pred_fallthru
          _
        // Predicated region
        $region37: #{srl_forward.1} parent=11 // pred_check
          %p474 = pneg %p226
        $region38: #{srl_forward.1} parent=11 // pred_check_branch
          %476 = sbr.rel (%p474) target = $region40
        $region39: #{srl_forward.1} parent=11 // pred_region
          _
        $region40: #{srl_forward.1} parent=11 // pred_fallthru
          _
        // Predicated region
        $region41: #{srl_forward.1} parent=11 // pred_check
          %p477 = pneg %p247
        $region42: #{srl_forward.1} parent=11 // pred_check_branch
          %479 = sbr.rel (%p477) target = $region44
        $region43: #{srl_forward.1} parent=11 // pred_region
          _
        $region44: #{srl_forward.1} parent=11 // pred_fallthru
          _
        // Predicated region
        $region45: #{srl_forward.1} parent=11 // pred_check
          %p480 = pneg %p268
        $region46: #{srl_forward.1} parent=11 // pred_check_branch
          %482 = sbr.rel (%p480) target = $region48
        $region47: #{srl_forward.1} parent=11 // pred_region
          _
        $region48: #{srl_forward.1} parent=11 // pred_fallthru
          _
        // Predicated region
        $region49: #{srl_forward.1} parent=11 // pred_check
          %p483 = pneg %p289
        $region50: #{srl_forward.1} parent=11 // pred_check_branch
          %485 = sbr.rel (%p483) target = $region52
        $region51: #{srl_forward.1} parent=11 // pred_region
          _
        $region52: #{srl_forward.1} parent=11 // pred_fallthru
          _
        // Predicated region
        $region53: #{srl_forward.1} parent=11 // pred_check
          %p486 = pneg %p310
        $region54: #{srl_forward.1} parent=11 // pred_check_branch
          %488 = sbr.rel (%p486) target = $region56
        $region55: #{srl_forward.1} parent=11 // pred_region
          _
        $region56: #{srl_forward.1} parent=11 // pred_fallthru
          _
        // Predicated region
        $region57: #{srl_forward.1} parent=11 // pred_check
          %p489 = pneg %p331
        $region58: #{srl_forward.1} parent=11 // pred_check_branch
          %491 = sbr.rel (%p489) target = $region60
        $region59: #{srl_forward.1} parent=11 // pred_region
          _
        $region60: #{srl_forward.1} parent=11 // pred_fallthru
          _
        // Predicated region
        $region61: #{srl_forward.1} parent=11 // pred_check
          %p492 = pneg %p352
        $region62: #{srl_forward.1} parent=11 // pred_check_branch
          %494 = sbr.rel (%p492) target = $region64
        $region63: #{srl_forward.1} parent=11 // pred_region
          _
        $region64: #{srl_forward.1} parent=11 // pred_fallthru
          _
        // Predicated region
        $region65: #{srl_forward.1} parent=11 // pred_check
          %p495 = pneg %p373
        $region66: #{srl_forward.1} parent=11 // pred_check_branch
          %497 = sbr.rel (%p495) target = $region68
        $region67: #{srl_forward.1} parent=11 // pred_region
          _
        $region68: #{srl_forward.1} parent=11 // pred_fallthru
          _
        // Predicated region
        $region69: #{srl_forward.1} parent=11 // pred_check
          %p498 = pneg %p394
        $region70: #{srl_forward.1} parent=11 // pred_check_branch
          %500 = sbr.rel (%p498) target = $region72
        $region71: #{srl_forward.1} parent=11 // pred_region
          _
        $region72: #{srl_forward.1} parent=11 // pred_fallthru
          _
        // Predicated region
        $region73: #{srl_forward.1} parent=11 // pred_check
          %p501 = pneg %p415
        $region74: #{srl_forward.1} parent=11 // pred_check_branch
          %503 = sbr.rel (%p501) target = $region76
        $region75: #{srl_forward.1} parent=11 // pred_region
          _
        $region76: #{srl_forward.1} parent=11 // pred_fallthru
          _
      $region12: #{srl_forward.1} parent=5 // pred_fallthru
        _
      %p504 = scmp.lt.s32.totalorder %s27, 2
      // Predicated region
      $region77: #{srl_forward.1} parent=5 // pred_check
        %p505 = pneg %p504
      $region78: #{srl_forward.1} parent=5 // pred_check_branch
        %507 = sbr.rel (%p505) target = $region80
      $region79: #{srl_forward.1} parent=5 // pred_region
        // Predicated region
        $region81: #{srl_forward.1} parent=79 // pred_check
          %p508 = pneg %p47
        $region82: #{srl_forward.1} parent=79 // pred_check_branch
          %510 = sbr.rel (%p508) target = $region84
        $region83: #{srl_forward.1} parent=79 // pred_region
          %p511 = scmp.lt.s32.totalorder %s27, 1
          %s512 = scalar_select %p511, %s27, 1
          %s513 = smul.addr %s512, 8
          %s514 = scalar_lea.vmem %s0, %s513
        $region84: #{srl_forward.1} parent=79 // pred_fallthru
          _
        // Predicated region
        $region85: #{srl_forward.1} parent=79 // pred_check
          %p515 = pneg %p73
        $region86: #{srl_forward.1} parent=79 // pred_check_branch
          %517 = sbr.rel (%p515) target = $region88
        $region87: #{srl_forward.1} parent=79 // pred_region
          %p518 = scmp.lt.s32.totalorder %s27, 1
          %s519 = scalar_select %p518, %s27, 1
          %s520 = scalar_lea.vmem %s1, %s519
        $region88: #{srl_forward.1} parent=79 // pred_fallthru
          _
      $region80: #{srl_forward.1} parent=5 // pred_fallthru
        _
      %p521 = scmp.le.s32.totalorder 1, %s27
      %p522 = scmp.lt.s32.totalorder %s27, 3
      %p523 = pnand %p521, %p522
      %p524 = pneg %p523
      // Predicated region
      $region89: #{srl_forward.1} parent=5 // pred_check
        _
      $region90: #{srl_forward.1} parent=5 // pred_check_branch
        %526 = sbr.rel (%p523) target = $region92
      $region91: #{srl_forward.1} parent=5 // pred_region
        %s527 = ssub.s32 %s27, 1
        %p528 = scmp.lt.s32.totalorder %s32, 1
        %s529 = scalar_select %p528, %s32, 1
        %s530 = smul.addr %s529, 8
        %s531 = scalar_lea.vmem %s0, %s530
        %p532 = pneg %p53
        %p533 = pneg %p50
        %p534 = scmp.lt.s32.totalorder %s32, 1
        %s535 = scalar_select %p534, %s32, 1
        %s536 = scalar_lea.vmem %s1, %s535
        %p537 = pneg %p79
        %p538 = pneg %p76
        %p539 = pneg %p100
        %p540 = pneg %p97
        %p541 = pneg %p121
        %p542 = pneg %p118
        %p543 = pneg %p142
        %p544 = pneg %p139
        %p545 = pneg %p163
        %p546 = pneg %p160
        %p547 = pneg %p184
        %p548 = pneg %p181
        %p549 = pneg %p205
        %p550 = pneg %p202
        %p551 = pneg %p226
        %p552 = pneg %p223
        %p553 = pneg %p247
        %p554 = pneg %p244
        %p555 = pneg %p268
        %p556 = pneg %p265
        %p557 = pneg %p289
        %p558 = pneg %p286
        %p559 = pneg %p310
        %p560 = pneg %p307
        %p561 = pneg %p331
        %p562 = pneg %p328
        %p563 = pneg %p352
        %p564 = pneg %p349
        %p565 = pneg %p373
        %p566 = pneg %p370
        %p567 = pneg %p394
        %p568 = pneg %p391
        %p569 = pneg %p415
        %p570 = pneg %p412
        %p571 = pneg %p441
        %p572 = pneg %p438
        %s573 = sand.u32 %s428, 1
        %s574 = scalar_lea.sflag [#allocation4], %s573
        %s575 = sand.u32 %s428, 1
        %s576 = smul.addr %s575, 8
        %s577 = scalar_lea.vmem [#allocation3], %s576
        %p578 = scmp.lt.s32.totalorder %s32, 1
        %s579 = scalar_select %p578, %s32, 1
        %s580 = smul.addr %s579, 8
        %s581 = scalar_lea.vmem %s0, %s580
        %p582 = scmp.lt.s32.totalorder %s32, 1
        %s583 = scalar_select %p582, %s32, 1
        %s584 = scalar_lea.vmem %s1, %s583
        %v586 = vld [vmem:[%s584] sm:$0x1]
        %v587 = vld [vmem:[%s581] sm:$0xff]
        %v588 = vld [vmem:[%s2] sm:$0x1]
        %v589 = vld [vmem:[%s3] sm:$0x1]
        %vm590 = vcmask 261120
        %v591 = vsel %vm590, %v587, 0.0
        %592 = vadd.xlane.f32.xlu0 %v591
        %v593 = vpop.xlane.xlu0 %592
        %v594 = vrcp.pop 32.0
        %v595 = vmul.f32 %v593, %v594
        %v596 = vsub.f32 %v587, %v595
        %v597 = vmul.f32 %v596, %v596
        %v598 = vsel %vm590, %v597, 0.0
        %599 = vadd.xlane.f32.xlu0 %v598
        %v600 = vpop.xlane.xlu0 %599
        %v601 = vmul.f32 %v600, %v594
        %v602 = vadd.f32 %v601, 1e-12
        %v603 = vrsqrt.pop %v602
        %v604 = vmul.f32 %v596, %v603
        %v606 = vlaneseq
        %v607 = vshrl.u32 %v606, 7
        %v608 = vsub.s32 0, %v607
        %v609 = vrot.slane %v588, %v608
        %v611 = vmul.f32 %v604, %v609
        %v613 = vlaneseq
        %v614 = vshrl.u32 %v613, 7
        %v615 = vsub.s32 0, %v614
        %v616 = vrot.slane %v589, %v615
        %v618 = vadd.f32 %v611, %v616
        loop: start=0, step=1, limit=2
        $region93: #{srl_forward.1} parent=91 // loop_pre_header
          _
        $region94: #{srl_forward.1} parent=91 // loop_header
          %s620 = sphi 0, %s624
          %p621 = scmp.ge.s32.totalorder %s620, 2
          %v625 = vphi %v618, %v1344
        $region95: #{srl_forward.1} parent=91 // loop_header_branch
          %623 = sbr.rel (%p621) target = $region99
        $region96: #{srl_forward.1} parent=91 // loop_body
          %v626 = vpack.c.bf16 %v625, %v625
          %s627 = smul.u32 %s620, 4
          %s628 = smul.addr %s627, 4
          %s629 = scalar_lea.vmem %s4, %s628
          %v630 = vld [vmem:[%s629] sm:$0xf]
          %v631 = vld [vmem:[%s629 + $0x4] sm:$0xf]
          %v632 = vld [vmem:[%s629 + $0x8] sm:$0xf]
          %v633 = vld [vmem:[%s629 + $0xc] sm:$0xf]
          %s634 = scalar_lea.vmem %s5, %s620
          %v635 = vld [vmem:[%s634] sm:$0x1]
          %v637 = vlaneseq
          %v638 = vshrl.u32 %v637, 7
          %v639 = vsub.s32 0, %v638
          %v640 = vrot.slane %v635, %v639
          %v646 = vunpack.c.l.b16 %v630
          %v647 = vunpack.c.l.b16 %v631
          %v648 = vunpack.c.l.b16 %v632
          %v649 = vunpack.c.l.b16 %v633
          %v650 = vpack.c.b16 %v647, %v646
          %v651 = vpack.c.b16 %v649, %v648
          %v655 = vsel %vm590, %v626, 0
          %657 = vmatprep.subr.bf16.mxu0 0
          %658 = vmatpush1.bf16.msra.mxu0 0
          %659 = vmatprep.subr.bf16.mxu0 0
          %660 = vmatpush1.bf16.msra.mxu0 0
          %661 = vmatprep.subr.bf16.mxu0 0
          %662 = vmatpush1.bf16.msra.mxu0 0
          %663 = vmatprep.subr.bf16.mxu0 0
          %664 = vmatpush1.bf16.msra.mxu0 0
          %665 = vmatprep.subr.bf16.mxu0 0
          %666 = vmatpush1.bf16.msra.mxu0 0
          %667 = vmatprep.subr.bf16.mxu0 0
          %668 = vmatpush1.bf16.msra.mxu0 0
          %669 = vmatprep.subr.bf16.mxu0 0
          %670 = vmatpush1.bf16.msra.mxu0 %v651
          %671 = vmatprep.subr.bf16.mxu0 0
          %672 = vmatpush1.bf16.msra.mxu0 %v650
          %673 = vmatprep.subr.bf16.mxu0 0
          %674 = vmatpush2.bf16.msra.mxu0 0
          %675 = vmatprep.subr.bf16.mxu0 0
          %676 = vmatpush2.bf16.msra.mxu0 0
          %677 = vmatprep.subr.bf16.mxu0 0
          %678 = vmatpush2.bf16.msra.mxu0 0
          %679 = vmatprep.subr.bf16.mxu0 0
          %680 = vmatpush2.bf16.msra.mxu0 0
          %681 = vmatprep.subr.bf16.mxu0 0
          %682 = vmatpush2.bf16.msra.mxu0 0
          %683 = vmatprep.subr.bf16.mxu0 0
          %684 = vmatpush2.bf16.msra.mxu0 0
          %685 = vmatprep.subr.bf16.mxu0 0
          %686 = vmatpush2.bf16.msra.mxu0 0
          %687 = vmatprep.subr.bf16.mxu0 0
          %688 = vmatpush2.bf16.msra.mxu0 0
          %689 = vmatprep.mubr.bf16.mxu0 0
          %690 = vmatmul.mubr.bf16.gmra.mxu0 %v655
          %v691 = vpop.f32.mrf.mxu0
          %v692 = vadd.f32 %v640, %v691
          %v693 = vpop.f32.mrf.mxu0
          %v694 = vpop.f32.mrf.mxu0
          %v695 = vpop.f32.mrf.mxu0
          %696 = vdwg.mxu0
          %v697 = vmul.f32 %v692, 0.25
          %v699 = vlaneseq
          %v700 = vshrl.u32 %v699, 7
          %v701 = vsub.s32 0, %v700
          %v702 = vrot.slane %v586, %v701
          %705 = vrot.lane.b32.xlu0 %v692, 96
          %v706 = vpop.permute.xlu0 %705
          %vm707 = vcmask 130048
          %v709 = vsel %vm707, %v697, 0
          %v711 = vsel %vm707, %v706, 0
          %713 = vmatprep.subr.mxu0 0.0
          %714 = vmatpush1.xpose.msra.mxu0 0.0
          %715 = vmatprep.subr.mxu0 0.0
          %716 = vmatpush1.xpose.msra.mxu0 0.0
          %717 = vmatprep.subr.mxu0 0.0
          %718 = vmatpush1.xpose.msra.mxu0 0.0
          %719 = vmatprep.subr.mxu0 0.0
          %720 = vmatpush1.xpose.msra.mxu0 0.0
          %721 = vmatprep.subr.mxu0 0.0
          %722 = vmatpush1.xpose.msra.mxu0 0.0
          %723 = vmatprep.subr.mxu0 0.0
          %724 = vmatpush1.xpose.msra.mxu0 0.0
          %725 = vmatprep.subr.mxu0 0.0
          %726 = vmatpush1.xpose.msra.mxu0 0.0
          %727 = vmatprep.subr.mxu0 0.0
          %728 = vmatpush1.xpose.msra.mxu0 0.0
          %729 = vmatprep.subr.mxu0 0.0
          %730 = vmatpush1.xpose.msra.mxu0 0.0
          %731 = vmatprep.subr.mxu0 0.0
          %732 = vmatpush1.xpose.msra.mxu0 0.0
          %733 = vmatprep.subr.mxu0 0.0
          %734 = vmatpush1.xpose.msra.mxu0 0.0
          %735 = vmatprep.subr.mxu0 0.0
          %736 = vmatpush1.xpose.msra.mxu0 0.0
          %737 = vmatprep.subr.mxu0 0.0
          %738 = vmatpush1.xpose.msra.mxu0 0.0
          %739 = vmatprep.subr.mxu0 0.0
          %740 = vmatpush1.xpose.msra.mxu0 0.0
          %741 = vmatprep.subr.mxu0 0.0
          %742 = vmatpush1.xpose.msra.mxu0 0.0
          %743 = vmatprep.subr.mxu0 0.0
          %744 = vmatpush1.xpose.msra.mxu0 %v711
          %745 = vmatprep.subr.mxu0 0.0
          %746 = vmatpush2.xpose.msra.mxu0 0.0
          %747 = vmatprep.subr.mxu0 0.0
          %748 = vmatpush2.xpose.msra.mxu0 0.0
          %749 = vmatprep.subr.mxu0 0.0
          %750 = vmatpush2.xpose.msra.mxu0 0.0
          %751 = vmatprep.subr.mxu0 0.0
          %752 = vmatpush2.xpose.msra.mxu0 0.0
          %753 = vmatprep.subr.mxu0 0.0
          %754 = vmatpush2.xpose.msra.mxu0 0.0
          %755 = vmatprep.subr.mxu0 0.0
          %756 = vmatpush2.xpose.msra.mxu0 0.0
          %757 = vmatprep.subr.mxu0 0.0
          %758 = vmatpush2.xpose.msra.mxu0 0.0
          %759 = vmatprep.subr.mxu0 0.0
          %760 = vmatpush2.xpose.msra.mxu0 0.0
          %761 = vmatprep.subr.mxu0 0.0
          %762 = vmatpush2.xpose.msra.mxu0 0.0
          %763 = vmatprep.subr.mxu0 0.0
          %764 = vmatpush2.xpose.msra.mxu0 0.0
          %765 = vmatprep.subr.mxu0 0.0
          %766 = vmatpush2.xpose.msra.mxu0 0.0
          %767 = vmatprep.subr.mxu0 0.0
          %768 = vmatpush2.xpose.msra.mxu0 0.0
          %769 = vmatprep.subr.mxu0 0.0
          %770 = vmatpush2.xpose.msra.mxu0 0.0
          %771 = vmatprep.subr.mxu0 0.0
          %772 = vmatpush2.xpose.msra.mxu0 0.0
          %773 = vmatprep.subr.mxu0 0.0
          %774 = vmatpush2.xpose.msra.mxu0 0.0
          %775 = vmatprep.subr.mxu0 0.0
          %776 = vmatpush2.xpose.msra.mxu0 0.0
          %777 = vmatprep.mubr.f32.mxu0 0.0
          %778 = vmatmul.mubr.f32.gmra.mxu0 %v709
          %v779 = vpop.f32.mrf.mxu0
          %v780 = vadd.f32 %v702, %v779
          %v781 = vpop.f32.mrf.mxu0
          %782 = vdwg.mxu0
          %vm783 = vcmask 64512
          %v784 = vsel %vm783, %v780, -inf
          %785 = vmax.xlane.f32.xlu0 %v784
          %v786 = vpop.xlane.xlu0 %785
          %v787 = vsub.f32 %v780, %v786
          %v788 = vmul.f32 %v787, 1.442695
          %v789 = vpow.pop %v788
          %v790 = vsel %vm783, %v789, 0.0
          %791 = vadd.xlane.f32.xlu0 %v790
          %v792 = vpop.xlane.xlu0 %791
          %v793 = vrcp.pop %v792
          %794 = vrot.lane.b32.xlu0 %v692, 64
          %v795 = vpop.permute.xlu0 %794
          %v798 = vsel %vm783, %v789, 0
          %800 = vmatprep.subr.mxu0 0.0
          %801 = vmatpush1.msra.mxu0 0.0
          %802 = vmatprep.subr.mxu0 0.0
          %803 = vmatpush1.msra.mxu0 0.0
          %804 = vmatprep.subr.mxu0 0.0
          %805 = vmatpush1.msra.mxu0 0.0
          %806 = vmatprep.subr.mxu0 0.0
          %807 = vmatpush1.msra.mxu0 0.0
          %808 = vmatprep.subr.mxu0 0.0
          %809 = vmatpush1.msra.mxu0 0.0
          %810 = vmatprep.subr.mxu0 0.0
          %811 = vmatpush1.msra.mxu0 0.0
          %812 = vmatprep.subr.mxu0 0.0
          %813 = vmatpush1.msra.mxu0 0.0
          %814 = vmatprep.subr.mxu0 0.0
          %815 = vmatpush1.msra.mxu0 0.0
          %816 = vmatprep.subr.mxu0 0.0
          %817 = vmatpush1.msra.mxu0 0.0
          %818 = vmatprep.subr.mxu0 0.0
          %819 = vmatpush1.msra.mxu0 0.0
          %820 = vmatprep.subr.mxu0 0.0
          %821 = vmatpush1.msra.mxu0 0.0
          %822 = vmatprep.subr.mxu0 0.0
          %823 = vmatpush1.msra.mxu0 0.0
          %824 = vmatprep.subr.mxu0 0.0
          %825 = vmatpush1.msra.mxu0 0.0
          %826 = vmatprep.subr.mxu0 0.0
          %827 = vmatpush1.msra.mxu0 0.0
          %828 = vmatprep.subr.mxu0 0.0
          %829 = vmatpush1.msra.mxu0 0.0
          %830 = vmatprep.subr.mxu0 0.0
          %831 = vmatpush1.msra.mxu0 %v795
          %832 = vmatprep.subr.mxu0 0.0
          %833 = vmatpush2.msra.mxu0 0.0
          %834 = vmatprep.subr.mxu0 0.0
          %835 = vmatpush2.msra.mxu0 0.0
          %836 = vmatprep.subr.mxu0 0.0
          %837 = vmatpush2.msra.mxu0 0.0
          %838 = vmatprep.subr.mxu0 0.0
          %839 = vmatpush2.msra.mxu0 0.0
          %840 = vmatprep.subr.mxu0 0.0
          %841 = vmatpush2.msra.mxu0 0.0
          %842 = vmatprep.subr.mxu0 0.0
          %843 = vmatpush2.msra.mxu0 0.0
          %844 = vmatprep.subr.mxu0 0.0
          %845 = vmatpush2.msra.mxu0 0.0
          %846 = vmatprep.subr.mxu0 0.0
          %847 = vmatpush2.msra.mxu0 0.0
          %848 = vmatprep.subr.mxu0 0.0
          %849 = vmatpush2.msra.mxu0 0.0
          %850 = vmatprep.subr.mxu0 0.0
          %851 = vmatpush2.msra.mxu0 0.0
          %852 = vmatprep.subr.mxu0 0.0
          %853 = vmatpush2.msra.mxu0 0.0
          %854 = vmatprep.subr.mxu0 0.0
          %855 = vmatpush2.msra.mxu0 0.0
          %856 = vmatprep.subr.mxu0 0.0
          %857 = vmatpush2.msra.mxu0 0.0
          %858 = vmatprep.subr.mxu0 0.0
          %859 = vmatpush2.msra.mxu0 0.0
          %860 = vmatprep.subr.mxu0 0.0
          %861 = vmatpush2.msra.mxu0 0.0
          %862 = vmatprep.subr.mxu0 0.0
          %863 = vmatpush2.msra.mxu0 0.0
          %864 = vmatprep.mubr.f32.mxu0 0.0
          %865 = vmatmul.mubr.f32.gmra.mxu0 %v798
          %v866 = vpop.f32.mrf.mxu0
          %v867 = vadd.f32 0.0, %v866
          %v868 = vpop.f32.mrf.mxu0
          %869 = vdwg.mxu0
          %v870 = vmul.f32 %v867, %v793
          %871 = vst.msk [vmem:[#allocation2] sm:$0xff] %vm707, %v870
          %872 = vrot.lane.b32.xlu0 %v697, 112
          %v873 = vpop.permute.xlu0 %872
          %874 = vrot.lane.b32.xlu0 %v692, 80
          %v875 = vpop.permute.xlu0 %874
          %v876 = vsel %vm707, %v873, 0
          %v878 = vsel %vm707, %v875, 0
          %880 = vmatprep.subr.mxu0 0.0
          %881 = vmatpush1.xpose.msra.mxu0 0.0
          %882 = vmatprep.subr.mxu0 0.0
          %883 = vmatpush1.xpose.msra.mxu0 0.0
          %884 = vmatprep.subr.mxu0 0.0
          %885 = vmatpush1.xpose.msra.mxu0 0.0
          %886 = vmatprep.subr.mxu0 0.0
          %887 = vmatpush1.xpose.msra.mxu0 0.0
          %888 = vmatprep.subr.mxu0 0.0
          %889 = vmatpush1.xpose.msra.mxu0 0.0
          %890 = vmatprep.subr.mxu0 0.0
          %891 = vmatpush1.xpose.msra.mxu0 0.0
          %892 = vmatprep.subr.mxu0 0.0
          %893 = vmatpush1.xpose.msra.mxu0 0.0
          %894 = vmatprep.subr.mxu0 0.0
          %895 = vmatpush1.xpose.msra.mxu0 0.0
          %896 = vmatprep.subr.mxu0 0.0
          %897 = vmatpush1.xpose.msra.mxu0 0.0
          %898 = vmatprep.subr.mxu0 0.0
          %899 = vmatpush1.xpose.msra.mxu0 0.0
          %900 = vmatprep.subr.mxu0 0.0
          %901 = vmatpush1.xpose.msra.mxu0 0.0
          %902 = vmatprep.subr.mxu0 0.0
          %903 = vmatpush1.xpose.msra.mxu0 0.0
          %904 = vmatprep.subr.mxu0 0.0
          %905 = vmatpush1.xpose.msra.mxu0 0.0
          %906 = vmatprep.subr.mxu0 0.0
          %907 = vmatpush1.xpose.msra.mxu0 0.0
          %908 = vmatprep.subr.mxu0 0.0
          %909 = vmatpush1.xpose.msra.mxu0 0.0
          %910 = vmatprep.subr.mxu0 0.0
          %911 = vmatpush1.xpose.msra.mxu0 %v878
          %912 = vmatprep.subr.mxu0 0.0
          %913 = vmatpush2.xpose.msra.mxu0 0.0
          %914 = vmatprep.subr.mxu0 0.0
          %915 = vmatpush2.xpose.msra.mxu0 0.0
          %916 = vmatprep.subr.mxu0 0.0
          %917 = vmatpush2.xpose.msra.mxu0 0.0
          %918 = vmatprep.subr.mxu0 0.0
          %919 = vmatpush2.xpose.msra.mxu0 0.0
          %920 = vmatprep.subr.mxu0 0.0
          %921 = vmatpush2.xpose.msra.mxu0 0.0
          %922 = vmatprep.subr.mxu0 0.0
          %923 = vmatpush2.xpose.msra.mxu0 0.0
          %924 = vmatprep.subr.mxu0 0.0
          %925 = vmatpush2.xpose.msra.mxu0 0.0
          %926 = vmatprep.subr.mxu0 0.0
          %927 = vmatpush2.xpose.msra.mxu0 0.0
          %928 = vmatprep.subr.mxu0 0.0
          %929 = vmatpush2.xpose.msra.mxu0 0.0
          %930 = vmatprep.subr.mxu0 0.0
          %931 = vmatpush2.xpose.msra.mxu0 0.0
          %932 = vmatprep.subr.mxu0 0.0
          %933 = vmatpush2.xpose.msra.mxu0 0.0
          %934 = vmatprep.subr.mxu0 0.0
          %935 = vmatpush2.xpose.msra.mxu0 0.0
          %936 = vmatprep.subr.mxu0 0.0
          %937 = vmatpush2.xpose.msra.mxu0 0.0
          %938 = vmatprep.subr.mxu0 0.0
          %939 = vmatpush2.xpose.msra.mxu0 0.0
          %940 = vmatprep.subr.mxu0 0.0
          %941 = vmatpush2.xpose.msra.mxu0 0.0
          %942 = vmatprep.subr.mxu0 0.0
          %943 = vmatpush2.xpose.msra.mxu0 0.0
          %944 = vmatprep.mubr.f32.mxu0 0.0
          %945 = vmatmul.mubr.f32.gmra.mxu0 %v876
          %v946 = vpop.f32.mrf.mxu0
          %v947 = vadd.f32 %v702, %v946
          %v948 = vpop.f32.mrf.mxu0
          %949 = vdwg.mxu0
          %v950 = vsel %vm783, %v947, -inf
          %951 = vmax.xlane.f32.xlu0 %v950
          %v952 = vpop.xlane.xlu0 %951
          %v953 = vsub.f32 %v947, %v952
          %v954 = vmul.f32 %v953, 1.442695
          %v955 = vpow.pop %v954
          %v956 = vsel %vm783, %v955, 0.0
          %957 = vadd.xlane.f32.xlu0 %v956
          %v958 = vpop.xlane.xlu0 %957
          %v959 = vrcp.pop %v958
          %960 = vrot.lane.b32.xlu0 %v692, 48
          %v961 = vpop.permute.xlu0 %960
          %v964 = vsel %vm783, %v955, 0
          %966 = vmatprep.subr.mxu0 0.0
          %967 = vmatpush1.msra.mxu0 0.0
          %968 = vmatprep.subr.mxu0 0.0
          %969 = vmatpush1.msra.mxu0 0.0
          %970 = vmatprep.subr.mxu0 0.0
          %971 = vmatpush1.msra.mxu0 0.0
          %972 = vmatprep.subr.mxu0 0.0
          %973 = vmatpush1.msra.mxu0 0.0
          %974 = vmatprep.subr.mxu0 0.0
          %975 = vmatpush1.msra.mxu0 0.0
          %976 = vmatprep.subr.mxu0 0.0
          %977 = vmatpush1.msra.mxu0 0.0
          %978 = vmatprep.subr.mxu0 0.0
          %979 = vmatpush1.msra.mxu0 0.0
          %980 = vmatprep.subr.mxu0 0.0
          %981 = vmatpush1.msra.mxu0 0.0
          %982 = vmatprep.subr.mxu0 0.0
          %983 = vmatpush1.msra.mxu0 0.0
          %984 = vmatprep.subr.mxu0 0.0
          %985 = vmatpush1.msra.mxu0 0.0
          %986 = vmatprep.subr.mxu0 0.0
          %987 = vmatpush1.msra.mxu0 0.0
          %988 = vmatprep.subr.mxu0 0.0
          %989 = vmatpush1.msra.mxu0 0.0
          %990 = vmatprep.subr.mxu0 0.0
          %991 = vmatpush1.msra.mxu0 0.0
          %992 = vmatprep.subr.mxu0 0.0
          %993 = vmatpush1.msra.mxu0 0.0
          %994 = vmatprep.subr.mxu0 0.0
          %995 = vmatpush1.msra.mxu0 0.0
          %996 = vmatprep.subr.mxu0 0.0
          %997 = vmatpush1.msra.mxu0 %v961
          %998 = vmatprep.subr.mxu0 0.0
          %999 = vmatpush2.msra.mxu0 0.0
          %1000 = vmatprep.subr.mxu0 0.0
          %1001 = vmatpush2.msra.mxu0 0.0
          %1002 = vmatprep.subr.mxu0 0.0
          %1003 = vmatpush2.msra.mxu0 0.0
          %1004 = vmatprep.subr.mxu0 0.0
          %1005 = vmatpush2.msra.mxu0 0.0
          %1006 = vmatprep.subr.mxu0 0.0
          %1007 = vmatpush2.msra.mxu0 0.0
          %1008 = vmatprep.subr.mxu0 0.0
          %1009 = vmatpush2.msra.mxu0 0.0
          %1010 = vmatprep.subr.mxu0 0.0
          %1011 = vmatpush2.msra.mxu0 0.0
          %1012 = vmatprep.subr.mxu0 0.0
          %1013 = vmatpush2.msra.mxu0 0.0
          %1014 = vmatprep.subr.mxu0 0.0
          %1015 = vmatpush2.msra.mxu0 0.0
          %1016 = vmatprep.subr.mxu0 0.0
          %1017 = vmatpush2.msra.mxu0 0.0
          %1018 = vmatprep.subr.mxu0 0.0
          %1019 = vmatpush2.msra.mxu0 0.0
          %1020 = vmatprep.subr.mxu0 0.0
          %1021 = vmatpush2.msra.mxu0 0.0
          %1022 = vmatprep.subr.mxu0 0.0
          %1023 = vmatpush2.msra.mxu0 0.0
          %1024 = vmatprep.subr.mxu0 0.0
          %1025 = vmatpush2.msra.mxu0 0.0
          %1026 = vmatprep.subr.mxu0 0.0
          %1027 = vmatpush2.msra.mxu0 0.0
          %1028 = vmatprep.subr.mxu0 0.0
          %1029 = vmatpush2.msra.mxu0 0.0
          %1030 = vmatprep.mubr.f32.mxu0 0.0
          %1031 = vmatmul.mubr.f32.gmra.mxu0 %v964
          %v1032 = vpop.f32.mrf.mxu0
          %v1033 = vadd.f32 0.0, %v1032
          %v1034 = vpop.f32.mrf.mxu0
          %1035 = vdwg.mxu0
          %v1036 = vmul.f32 %v1033, %v959
          %1038 = vrot.lane.b32.xlu0 %v1036, 16
          %v1039 = vpop.permute.xlu0 %1038
          %vm1041 = vcmask 261248
          %1042 = vst.msk [vmem:[#allocation2] sm:$0xff] %vm1041, %v1039
          %v1043 = vld [vmem:[#allocation2] sm:$0xff]
          %v1044 = vpack.c.bf16 %v1043, %v1043
          %s1045 = smul.addr %s627, 4
          %s1046 = scalar_lea.vmem %s6, %s1045
          %v1047 = vld [vmem:[%s1046] sm:$0xf]
          %v1048 = vld [vmem:[%s1046 + $0x4] sm:$0xf]
          %v1049 = vld [vmem:[%s1046 + $0x8] sm:$0xf]
          %v1050 = vld [vmem:[%s1046 + $0xc] sm:$0xf]
          %s1051 = scalar_lea.vmem %s7, %s620
          %v1052 = vld [vmem:[%s1051] sm:$0x1]
          %v1054 = vlaneseq
          %v1055 = vshrl.u32 %v1054, 7
          %v1056 = vsub.s32 0, %v1055
          %v1057 = vrot.slane %v1052, %v1056
          %v1063 = vunpack.c.l.b16 %v1047
          %v1064 = vunpack.c.l.b16 %v1048
          %v1065 = vunpack.c.l.b16 %v1049
          %v1066 = vunpack.c.l.b16 %v1050
          %v1067 = vpack.c.b16 %v1064, %v1063
          %v1068 = vpack.c.b16 %v1066, %v1065
          %v1072 = vsel %vm590, %v1044, 0
          %1074 = vmatprep.subr.bf16.mxu0 0
          %1075 = vmatpush1.bf16.msra.mxu0 0
          %1076 = vmatprep.subr.bf16.mxu0 0
          %1077 = vmatpush1.bf16.msra.mxu0 0
          %1078 = vmatprep.subr.bf16.mxu0 0
          %1079 = vmatpush1.bf16.msra.mxu0 0
          %1080 = vmatprep.subr.bf16.mxu0 0
          %1081 = vmatpush1.bf16.msra.mxu0 0
          %1082 = vmatprep.subr.bf16.mxu0 0
          %1083 = vmatpush1.bf16.msra.mxu0 0
          %1084 = vmatprep.subr.bf16.mxu0 0
          %1085 = vmatpush1.bf16.msra.mxu0 0
          %1086 = vmatprep.subr.bf16.mxu0 0
          %1087 = vmatpush1.bf16.msra.mxu0 %v1068
          %1088 = vmatprep.subr.bf16.mxu0 0
          %1089 = vmatpush1.bf16.msra.mxu0 %v1067
          %1090 = vmatprep.subr.bf16.mxu0 0
          %1091 = vmatpush2.bf16.msra.mxu0 0
          %1092 = vmatprep.subr.bf16.mxu0 0
          %1093 = vmatpush2.bf16.msra.mxu0 0
          %1094 = vmatprep.subr.bf16.mxu0 0
          %1095 = vmatpush2.bf16.msra.mxu0 0
          %1096 = vmatprep.subr.bf16.mxu0 0
          %1097 = vmatpush2.bf16.msra.mxu0 0
          %1098 = vmatprep.subr.bf16.mxu0 0
          %1099 = vmatpush2.bf16.msra.mxu0 0
          %1100 = vmatprep.subr.bf16.mxu0 0
          %1101 = vmatpush2.bf16.msra.mxu0 0
          %1102 = vmatprep.subr.bf16.mxu0 0
          %1103 = vmatpush2.bf16.msra.mxu0 0
          %1104 = vmatprep.subr.bf16.mxu0 0
          %1105 = vmatpush2.bf16.msra.mxu0 0
          %1106 = vmatprep.mubr.bf16.mxu0 0
          %1107 = vmatmul.mubr.bf16.gmra.mxu0 %v1072
          %v1108 = vpop.f32.mrf.mxu0
          %v1109 = vadd.f32 %v1057, %v1108
          %v1110 = vpop.f32.mrf.mxu0
          %v1111 = vpop.f32.mrf.mxu0
          %v1112 = vpop.f32.mrf.mxu0
          %1113 = vdwg.mxu0
          %v1114 = vadd.f32 %v1109, %v625
          %s1115 = scalar_lea.vmem %s8, %s620
          %v1116 = vld [vmem:[%s1115] sm:$0x1]
          %s1117 = scalar_lea.vmem %s9, %s620
          %v1118 = vld [vmem:[%s1117] sm:$0x1]
          %v1119 = vsel %vm590, %v1114, 0.0
          %1120 = vadd.xlane.f32.xlu0 %v1119
          %v1121 = vpop.xlane.xlu0 %1120
          %v1122 = vmul.f32 %v1121, %v594
          %v1123 = vsub.f32 %v1114, %v1122
          %v1124 = vmul.f32 %v1123, %v1123
          %v1125 = vsel %vm590, %v1124, 0.0
          %1126 = vadd.xlane.f32.xlu0 %v1125
          %v1127 = vpop.xlane.xlu0 %1126
          %v1128 = vmul.f32 %v1127, %v594
          %v1129 = vadd.f32 %v1128, 1e-12
          %v1130 = vrsqrt.pop %v1129
          %v1131 = vmul.f32 %v1123, %v1130
          %v1133 = vlaneseq
          %v1134 = vshrl.u32 %v1133, 7
          %v1135 = vsub.s32 0, %v1134
          %v1136 = vrot.slane %v1116, %v1135
          %v1138 = vmul.f32 %v1131, %v1136
          %v1140 = vlaneseq
          %v1141 = vshrl.u32 %v1140, 7
          %v1142 = vsub.s32 0, %v1141
          %v1143 = vrot.slane %v1118, %v1142
          %v1145 = vadd.f32 %v1138, %v1143
          %v1146 = vpack.c.bf16 %v1145, %v1145
          %s1147 = smul.addr %s627, 4
          %s1148 = scalar_lea.vmem %s10, %s1147
          %v1149 = vld [vmem:[%s1148] sm:$0xf]
          %v1150 = vld [vmem:[%s1148 + $0x4] sm:$0xf]
          %v1151 = vld [vmem:[%s1148 + $0x8] sm:$0xf]
          %v1152 = vld [vmem:[%s1148 + $0xc] sm:$0xf]
          %s1153 = scalar_lea.vmem %s11, %s620
          %v1154 = vld [vmem:[%s1153] sm:$0x1]
          %v1156 = vlaneseq
          %v1157 = vshrl.u32 %v1156, 7
          %v1158 = vsub.s32 0, %v1157
          %v1159 = vrot.slane %v1154, %v1158
          %v1165 = vunpack.c.l.b16 %v1149
          %v1166 = vunpack.c.l.b16 %v1150
          %v1167 = vunpack.c.l.b16 %v1151
          %v1168 = vunpack.c.l.b16 %v1152
          %v1169 = vpack.c.b16 %v1166, %v1165
          %v1170 = vpack.c.b16 %v1168, %v1167
          %v1174 = vsel %vm590, %v1146, 0
          %1176 = vmatprep.subr.bf16.mxu0 0
          %1177 = vmatpush1.bf16.msra.mxu0 0
          %1178 = vmatprep.subr.bf16.mxu0 0
          %1179 = vmatpush1.bf16.msra.mxu0 0
          %1180 = vmatprep.subr.bf16.mxu0 0
          %1181 = vmatpush1.bf16.msra.mxu0 0
          %1182 = vmatprep.subr.bf16.mxu0 0
          %1183 = vmatpush1.bf16.msra.mxu0 0
          %1184 = vmatprep.subr.bf16.mxu0 0
          %1185 = vmatpush1.bf16.msra.mxu0 0
          %1186 = vmatprep.subr.bf16.mxu0 0
          %1187 = vmatpush1.bf16.msra.mxu0 0
          %1188 = vmatprep.subr.bf16.mxu0 0
          %1189 = vmatpush1.bf16.msra.mxu0 %v1170
          %1190 = vmatprep.subr.bf16.mxu0 0
          %1191 = vmatpush1.bf16.msra.mxu0 %v1169
          %1192 = vmatprep.subr.bf16.mxu0 0
          %1193 = vmatpush2.bf16.msra.mxu0 0
          %1194 = vmatprep.subr.bf16.mxu0 0
          %1195 = vmatpush2.bf16.msra.mxu0 0
          %1196 = vmatprep.subr.bf16.mxu0 0
          %1197 = vmatpush2.bf16.msra.mxu0 0
          %1198 = vmatprep.subr.bf16.mxu0 0
          %1199 = vmatpush2.bf16.msra.mxu0 0
          %1200 = vmatprep.subr.bf16.mxu0 0
          %1201 = vmatpush2.bf16.msra.mxu0 0
          %1202 = vmatprep.subr.bf16.mxu0 0
          %1203 = vmatpush2.bf16.msra.mxu0 0
          %1204 = vmatprep.subr.bf16.mxu0 0
          %1205 = vmatpush2.bf16.msra.mxu0 0
          %1206 = vmatprep.subr.bf16.mxu0 0
          %1207 = vmatpush2.bf16.msra.mxu0 0
          %1208 = vmatprep.mubr.bf16.mxu0 0
          %1209 = vmatmul.mubr.bf16.gmra.mxu0 %v1174
          %v1210 = vpop.f32.mrf.mxu0
          %v1211 = vadd.f32 %v1159, %v1210
          %v1212 = vpop.f32.mrf.mxu0
          %v1213 = vpop.f32.mrf.mxu0
          %v1214 = vpop.f32.mrf.mxu0
          %1215 = vdwg.mxu0
          %v1216 = vmul.f32 %v1211, 0.5
          %v1217 = vmul.f32 %v1211, 0.044715
          %v1218 = vmul.f32 %v1217, %v1211
          %v1219 = vmul.f32 %v1218, %v1211
          %v1220 = vadd.f32 %v1211, %v1219
          %v1221 = vmul.f32 %v1220, 0.7978846
          %v1222 = vtanh.pop %v1221
          %v1223 = vadd.f32 %v1222, 1.0
          %v1224 = vmul.f32 %v1216, %v1223
          %v1225 = vpack.c.bf16 %v1224, %v1224
          %s1226 = smul.u32 %s620, 8
          %s1227 = smul.addr %s1226, 4
          %s1228 = scalar_lea.vmem %s12, %s1227
          %v1229 = vld [vmem:[%s1228] sm:$0xf]
          %v1230 = vld [vmem:[%s1228 + $0x4] sm:$0xf]
          %v1231 = vld [vmem:[%s1228 + $0x8] sm:$0xf]
          %v1232 = vld [vmem:[%s1228 + $0xc] sm:$0xf]
          %v1233 = vld [vmem:[%s1228 + $0x10] sm:$0xf]
          %v1234 = vld [vmem:[%s1228 + $0x14] sm:$0xf]
          %v1235 = vld [vmem:[%s1228 + $0x18] sm:$0xf]
          %v1236 = vld [vmem:[%s1228 + $0x1c] sm:$0xf]
          %s1237 = scalar_lea.vmem %s13, %s620
          %v1238 = vld [vmem:[%s1237] sm:$0x1]
          %v1240 = vlaneseq
          %v1241 = vshrl.u32 %v1240, 7
          %v1242 = vsub.s32 0, %v1241
          %v1243 = vrot.slane %v1238, %v1242
          %v1253 = vunpack.c.l.b16 %v1229
          %v1254 = vunpack.c.l.b16 %v1230
          %v1255 = vunpack.c.l.b16 %v1231
          %v1256 = vunpack.c.l.b16 %v1232
          %v1257 = vunpack.c.l.b16 %v1233
          %v1258 = vunpack.c.l.b16 %v1234
          %v1259 = vunpack.c.l.b16 %v1235
          %v1260 = vunpack.c.l.b16 %v1236
          %v1261 = vpack.c.b16 %v1254, %v1253
          %v1262 = vpack.c.b16 %v1256, %v1255
          %v1263 = vpack.c.b16 %v1258, %v1257
          %v1264 = vpack.c.b16 %v1260, %v1259
          %vm1269 = vcmask 523264
          %v1271 = vsel %vm1269, %v1225, 0
          %1273 = vmatprep.subr.bf16.mxu0 0
          %1274 = vmatpush1.bf16.msra.mxu0 0
          %1275 = vmatprep.subr.bf16.mxu0 0
          %1276 = vmatpush1.bf16.msra.mxu0 0
          %1277 = vmatprep.subr.bf16.mxu0 0
          %1278 = vmatpush1.bf16.msra.mxu0 0
          %1279 = vmatprep.subr.bf16.mxu0 0
          %1280 = vmatpush1.bf16.msra.mxu0 0
          %1281 = vmatprep.subr.bf16.mxu0 0
          %1282 = vmatpush1.bf16.msra.mxu0 %v1264
          %1283 = vmatprep.subr.bf16.mxu0 0
          %1284 = vmatpush1.bf16.msra.mxu0 %v1263
          %1285 = vmatprep.subr.bf16.mxu0 0
          %1286 = vmatpush1.bf16.msra.mxu0 %v1262
          %1287 = vmatprep.subr.bf16.mxu0 0
          %1288 = vmatpush1.bf16.msra.mxu0 %v1261
          %1289 = vmatprep.subr.bf16.mxu0 0
          %1290 = vmatpush2.bf16.msra.mxu0 0
          %1291 = vmatprep.subr.bf16.mxu0 0
          %1292 = vmatpush2.bf16.msra.mxu0 0
          %1293 = vmatprep.subr.bf16.mxu0 0
          %1294 = vmatpush2.bf16.msra.mxu0 0
          %1295 = vmatprep.subr.bf16.mxu0 0
          %1296 = vmatpush2.bf16.msra.mxu0 0
          %1297 = vmatprep.subr.bf16.mxu0 0
          %1298 = vmatpush2.bf16.msra.mxu0 0
          %1299 = vmatprep.subr.bf16.mxu0 0
          %1300 = vmatpush2.bf16.msra.mxu0 0
          %1301 = vmatprep.subr.bf16.mxu0 0
          %1302 = vmatpush2.bf16.msra.mxu0 0
          %1303 = vmatprep.subr.bf16.mxu0 0
          %1304 = vmatpush2.bf16.msra.mxu0 0
          %1305 = vmatprep.mubr.bf16.mxu0 0
          %1306 = vmatmul.mubr.bf16.gmra.mxu0 %v1271
          %v1307 = vpop.f32.mrf.mxu0
          %v1308 = vadd.f32 %v1243, %v1307
          %v1309 = vpop.f32.mrf.mxu0
          %v1310 = vpop.f32.mrf.mxu0
          %v1311 = vpop.f32.mrf.mxu0
          %1312 = vdwg.mxu0
          %v1313 = vadd.f32 %v1308, %v1145
          %s1314 = scalar_lea.vmem %s14, %s620
          %v1315 = vld [vmem:[%s1314] sm:$0x1]
          %s1316 = scalar_lea.vmem %s15, %s620
          %v1317 = vld [vmem:[%s1316] sm:$0x1]
          %v1318 = vsel %vm590, %v1313, 0.0
          %1319 = vadd.xlane.f32.xlu0 %v1318
          %v1320 = vpop.xlane.xlu0 %1319
          %v1321 = vmul.f32 %v1320, %v594
          %v1322 = vsub.f32 %v1313, %v1321
          %v1323 = vmul.f32 %v1322, %v1322
          %v1324 = vsel %vm590, %v1323, 0.0
          %1325 = vadd.xlane.f32.xlu0 %v1324
          %v1326 = vpop.xlane.xlu0 %1325
          %v1327 = vmul.f32 %v1326, %v594
          %v1328 = vadd.f32 %v1327, 1e-12
          %v1329 = vrsqrt.pop %v1328
          %v1330 = vmul.f32 %v1322, %v1329
          %v1332 = vlaneseq
          %v1333 = vshrl.u32 %v1332, 7
          %v1334 = vsub.s32 0, %v1333
          %v1335 = vrot.slane %v1315, %v1334
          %v1337 = vmul.f32 %v1330, %v1335
          %v1339 = vlaneseq
          %v1340 = vshrl.u32 %v1339, 7
          %v1341 = vsub.s32 0, %v1340
          %v1342 = vrot.slane %v1317, %v1341
          %v1344 = vadd.f32 %v1337, %v1342
        $region97: #{srl_forward.1} parent=91 // loop_footer
          %s624 = sadd.s32 1, %s620
        $region98: #{srl_forward.1} parent=91 // loop_footer_branch
          %619 = sbr.rel target = $region94
        $region99: #{srl_forward.1} parent=91 // loop_exit
          _
        %v1345 = vpack.c.bf16 %v625, %v625
        %v1346 = vld [vmem:[%s16] sm:$0xf]
        %v1347 = vld [vmem:[%s16 + $0x4] sm:$0xf]
        %v1348 = vld [vmem:[%s16 + $0x8] sm:$0xf]
        %v1349 = vld [vmem:[%s16 + $0xc] sm:$0xf]
        %v1350 = vld [vmem:[%s17] sm:$0x1]
        %v1352 = vlaneseq
        %v1353 = vshrl.u32 %v1352, 7
        %v1354 = vsub.s32 0, %v1353
        %v1355 = vrot.slane %v1350, %v1354
        %v1361 = vunpack.c.l.b16 %v1346
        %v1362 = vunpack.c.l.b16 %v1347
        %v1363 = vunpack.c.l.b16 %v1348
        %v1364 = vunpack.c.l.b16 %v1349
        %v1365 = vpack.c.b16 %v1362, %v1361
        %v1366 = vpack.c.b16 %v1364, %v1363
        %v1370 = vsel %vm590, %v1345, 0
        %1372 = vmatprep.subr.bf16.mxu0 0
        %1373 = vmatpush1.bf16.msra.mxu0 0
        %1374 = vmatprep.subr.bf16.mxu0 0
        %1375 = vmatpush1.bf16.msra.mxu0 0
        %1376 = vmatprep.subr.bf16.mxu0 0
        %1377 = vmatpush1.bf16.msra.mxu0 0
        %1378 = vmatprep.subr.bf16.mxu0 0
        %1379 = vmatpush1.bf16.msra.mxu0 0
        %1380 = vmatprep.subr.bf16.mxu0 0
        %1381 = vmatpush1.bf16.msra.mxu0 0
        %1382 = vmatprep.subr.bf16.mxu0 0
        %1383 = vmatpush1.bf16.msra.mxu0 0
        %1384 = vmatprep.subr.bf16.mxu0 0
        %1385 = vmatpush1.bf16.msra.mxu0 %v1366
        %1386 = vmatprep.subr.bf16.mxu0 0
        %1387 = vmatpush1.bf16.msra.mxu0 %v1365
        %1388 = vmatprep.subr.bf16.mxu0 0
        %1389 = vmatpush2.bf16.msra.mxu0 0
        %1390 = vmatprep.subr.bf16.mxu0 0
        %1391 = vmatpush2.bf16.msra.mxu0 0
        %1392 = vmatprep.subr.bf16.mxu0 0
        %1393 = vmatpush2.bf16.msra.mxu0 0
        %1394 = vmatprep.subr.bf16.mxu0 0
        %1395 = vmatpush2.bf16.msra.mxu0 0
        %1396 = vmatprep.subr.bf16.mxu0 0
        %1397 = vmatpush2.bf16.msra.mxu0 0
        %1398 = vmatprep.subr.bf16.mxu0 0
        %1399 = vmatpush2.bf16.msra.mxu0 0
        %1400 = vmatprep.subr.bf16.mxu0 0
        %1401 = vmatpush2.bf16.msra.mxu0 0
        %1402 = vmatprep.subr.bf16.mxu0 0
        %1403 = vmatpush2.bf16.msra.mxu0 0
        %1404 = vmatprep.mubr.bf16.mxu0 0
        %1405 = vmatmul.mubr.bf16.gmra.mxu0 %v1370
        %v1406 = vpop.f32.mrf.mxu0
        %v1407 = vadd.f32 %v1355, %v1406
        %v1408 = vpop.f32.mrf.mxu0
        %v1409 = vpop.f32.mrf.mxu0
        %v1410 = vpop.f32.mrf.mxu0
        %1411 = vdwg.mxu0
        %1412 = vst [vmem:[%s577] sm:$0xff] %v1407
        %s1413 = sand.u32 %s428, 1
        %s1414 = scalar_lea.sflag [#allocation4], %s1413
        %s1415 = sand.u32 %s428, 1
        %s1416 = smul.addr %s1415, 8
        %s1417 = scalar_lea.vmem [#allocation3], %s1416
        // Predicated region
        $region100: #{srl_forward.1} parent=91 // pred_check
          %p1418 = pneg %p438
        $region101: #{srl_forward.1} parent=91 // pred_check_branch
          %1420 = sbr.rel (%p1418) target = $region103
        $region102: #{srl_forward.1} parent=91 // pred_region
          %s1422 = ssub.s32 128, 128
          %1423 = vsyncadd %s1414, %s1422
          %s1424 = smul.addr %s32, 128
          %s1425 = scalar_lea.hbm %s18, %s1424
          %s1427 = sshll.u32 %s1417, 4
          %s1428 = int_to_ptr.vmem [resolvable:$true] %s1427
          %1430 = dma.vmem_to_hbm [thread:$0]  %s1428, 128, %s1425, %s1414
        $region103: #{srl_forward.1} parent=91 // pred_fallthru
          _
      $region92: #{srl_forward.1} parent=5 // pred_fallthru
        _
      %p1431 = scmp.le.s32.totalorder 2, %s27
      // Predicated region
      $region104: #{srl_forward.1} parent=5 // pred_check
        %p1432 = pneg %p1431
      $region105: #{srl_forward.1} parent=5 // pred_check_branch
        %1434 = sbr.rel (%p1432) target = $region107
      $region106: #{srl_forward.1} parent=5 // pred_region
        %s1435 = ssub.s32 %s27, 2
        // Predicated region
        $region108: #{srl_forward.1} parent=106 // pred_check
          %p1436 = pneg %p444
        $region109: #{srl_forward.1} parent=106 // pred_check_branch
          %1438 = sbr.rel (%p1436) target = $region111
        $region110: #{srl_forward.1} parent=106 // pred_region
          %s1439 = sand.u32 %s429, 1
          %s1440 = scalar_lea.sflag [#allocation4], %s1439
          %s1441 = sand.u32 %s429, 1
          %s1442 = smul.addr %s1441, 8
          %s1443 = scalar_lea.vmem [#allocation3], %s1442
          %1444 = dma.done %s1440, 128
        $region111: #{srl_forward.1} parent=106 // pred_fallthru
          _
      $region107: #{srl_forward.1} parent=5 // pred_fallthru
        _
    $region6: #{srl_forward.1} parent=1 // loop_footer
      %s31 = sadd.s32 1, %s27
    $region7: #{srl_forward.1} parent=1 // loop_footer_branch
      %26 = sbr.rel target = $region3
    $region8: #{srl_forward.1} parent=1 // loop_exit
      _
    %1445 = vsyncpa [#allocation4], 1
    %s1446 = scalar_lea.sflag [#allocation4], 1
    %1447 = vsyncpa %s1446, 1

</llo_original>
